<compile_context>
chip_gen: v7x
topology: tpu7x:2x2x1
jax: 0.10.0
libtpu: 0.0.40
codegen_flags: <defaults>
</compile_context>

<pallas_src>
import jax
import jax.numpy as jnp
import numpy as np
from jax import lax
from jax.experimental import pallas as pl
from jax.experimental.pallas import tpu as pltpu

EPS = 1e-5
NEG_SLOPE = 0.01


def _add_rolled(c, n, shift, axis):
    """c + jnp.roll(n, shift, axis) for shift in {-1,+1} without a rolled copy."""
    size = n.shape[axis]
    sl = lambda x, lo, hi: lax.slice_in_dim(x, lo, hi, axis=axis)
    if shift == 1:
        # rolled = [n[-1], n[0], ..., n[size-2]]
        head = sl(c, 0, 1) + sl(n, size - 1, size)
        tail = sl(c, 1, size) + sl(n, 0, size - 1)
    else:
        # rolled = [n[1], ..., n[size-1], n[0]]
        head = sl(c, 0, size - 1) + sl(n, 1, size)
        tail = sl(c, size - 1, size) + sl(n, 0, 1)
    return jnp.concatenate([head, tail], axis=axis)


def _sum_all(x):
    """Full (D,H,W) reduction: per-lane partials, then one cross-lane reduce."""
    part = jnp.sum(x, axis=(0, 1), keepdims=True)      # (1, 1, W)
    return jnp.sum(part, axis=2, keepdims=True)         # (1, 1, 1)


def unroll_max_kernel(c_ref, n_ref, gamma_ref, beta_ref, out_ref):
    idx = pl.program_id(0)
    gamma = gamma_ref[idx]          # f32 scalar from SMEM
    beta = beta_ref[idx]            # f32 scalar from SMEM

    c = c_ref[0]                    # (D, H, W) f32, one InstanceNorm instance
    n = n_ref[0]                    # (D, H, W) f32
    d, h, w = c.shape
    inv_v = 1.0 / float(d * h * w)

    # InstanceNorm mean shared by all 6 variants: mean(c + roll(n)) = mean(c) + mean(n).
    mean = (_sum_all(c) + _sum_all(n)) * inv_v           # (1,1,1)

    acc = jnp.zeros_like(c)         # torch: concat = zeros_like(centre)
    for variant in range(6):        # statically unrolled
        shift = 1 if variant % 2 else -1                 # == int((variant % 2 - 0.5) * 2)
        axis = variant // 2                              # 0:D (major) 1:H (sublane) 2:W (lane)
        if axis == 2:
            # Native lane rotate on the XLU slot.  The final max over both W
            # variants is invariant to the rotate sign convention.
            s = c + pltpu.roll(n, shift % w, axis=2)
        else:
            s = _add_rolled(c, n, shift, axis)           # fused slice-adds, no rolled copy

        # Variance via E[s^2] - mean^2 (f32 accumulation, shared mean).
        var = _sum_all(s * s) * inv_v - mean * mean
        # Fold InstanceNorm + affine into one per-instance scale/bias.
        scale = lax.rsqrt(var + EPS) * gamma             # (1,1,1)
        bias = beta - mean * scale                       # (1,1,1)
        y = s * scale + bias
        act = jnp.where(y >= 0, y, NEG_SLOPE * y)        # LeakyReLU(0.01)
        acc = jnp.maximum(acc, act)

    out_ref[0] = acc


@jax.jit
def unroll_max(centre, neighbour, gamma, beta):
    """centre, neighbour: (N, C, D, H, W) f32; gamma, beta: (C,) f32."""
    n, c, d, h, w = centre.shape
    nc = n * c

    # Free reshapes only (N, C are leading contiguous dims): no HBM transposes.
    centre_r = centre.reshape(nc, d, h, w)
    neighbour_r = neighbour.reshape(nc, d, h, w)
    gamma_nc = jnp.tile(gamma, n)      # instance i = n*C + c  ->  gamma[c]
    beta_nc = jnp.tile(beta, n)

    blk = pl.BlockSpec((1, d, h, w), lambda i: (i, 0, 0, 0))
    smem = pl.BlockSpec(memory_space=pltpu.MemorySpace.SMEM)

    total = nc * d * h * w
    cost = pl.CostEstimate(
        flops=int(50 * total),                    # 6 variants x ~8 elementwise ops + stats
        transcendentals=int(6 * nc),              # rsqrt per variant per instance
        bytes_accessed=int(3 * total * 4),        # read centre + neighbour, write out
    )

    out_r = pl.pallas_call(
        unroll_max_kernel,
        out_shape=jax.ShapeDtypeStruct((nc, d, h, w), centre.dtype),
        grid=(nc,),
        in_specs=[blk, blk, smem, smem],
        out_specs=blk,
        compiler_params=pltpu.CompilerParams(
            dimension_semantics=("parallel",),    # v7x: split instances across both TCs
            vmem_limit_bytes=32 * 1024 * 1024,    # safe on v5e/v6e/v7x
        ),
        cost_estimate=cost,
    )(centre_r, neighbour_r, gamma_nc, beta_nc)

    return out_r.reshape(n, c, d, h, w)


# ----- pure-JAX reference (mirrors the torch module semantics) --------------
def _norm_relu_ref(x, gamma, beta):
    mean = jnp.mean(x, axis=(2, 3, 4), keepdims=True)
    var = jnp.mean((x - mean) ** 2, axis=(2, 3, 4), keepdims=True)
    y = (x - mean) * lax.rsqrt(var + EPS)
    y = y * gamma[None, :, None, None, None] + beta[None, :, None, None, None]
    return jnp.where(y >= 0, y, NEG_SLOPE * y)


def unroll_max_ref(centre, neighbour, gamma, beta):
    concat = jnp.zeros_like(centre)
    for i in range(6):
        shift = int((i % 2 - 0.5) * 2)
        dim = i // 2 + 2
        nb_sum = centre + jnp.roll(neighbour, shift, axis=dim)
        concat = jnp.maximum(concat, _norm_relu_ref(nb_sum, gamma, beta))
    return concat


if __name__ == "__main__":
    # Small test shape; W=128 keeps the minor (lane) dim dense and aligned.
    N, C, D, H, W = 2, 4, 8, 16, 128

    key = jax.random.PRNGKey(0)
    k1, k2 = jax.random.split(key)
    centre = jax.random.normal(k1, (N, C, D, H, W), dtype=jnp.float32)
    neighbour = jax.random.normal(k2, (N, C, D, H, W), dtype=jnp.float32)

    # deterministic affine params for the InstanceNorm inside norm_relu
    gamma = 1.0 + 0.1 * jnp.arange(C, dtype=jnp.float32)
    beta = 0.05 * jnp.arange(C, dtype=jnp.float32) - 0.1

    out = unroll_max(centre, neighbour, gamma, beta)
    out = jax.block_until_ready(out)

    ref = unroll_max_ref(centre, neighbour, gamma, beta)
    np.testing.assert_allclose(np.asarray(out), np.asarray(ref),
                               rtol=1e-4, atol=1e-4)

    print("KERNEL_OK")
</pallas_src>

<mosaic_0001>
module attributes {stable_mosaic.version = 11 : i64} {
  func.func @unroll_max_kernel(%arg0: i32, %arg1: memref<1x8x16x128xf32, #tpu.memory_space<vmem>>, %arg2: memref<1x8x16x128xf32, #tpu.memory_space<vmem>>, %arg3: memref<8xf32, #tpu.memory_space<smem>>, %arg4: memref<8xf32, #tpu.memory_space<smem>>, %arg5: memref<1x8x16x128xf32, #tpu.memory_space<vmem>>) attributes {dimension_semantics = [#tpu.dimension_semantics<parallel>], iteration_bounds = array<i64: 8>, scalar_prefetch = 0 : i64, scratch_operands = 0 : i64, tpu.core_type = #tpu.core_type<tc>, window_params = [{transform_indices = @transform_0, window_bounds = array<i64: 1, 8, 16, 128>}, {transform_indices = @transform_1, window_bounds = array<i64: 1, 8, 16, 128>}, {transform_indices = @transform_2, window_bounds = array<i64: 8>}, {transform_indices = @transform_3, window_bounds = array<i64: 8>}, {transform_indices = @transform_4, window_bounds = array<i64: 1, 8, 16, 128>}]} {
    %0 = arith.index_cast %arg0 : i32 to index
    %1 = memref.load %arg3[%0] : memref<8xf32, #tpu.memory_space<smem>>
    %2 = arith.index_cast %arg0 : i32 to index
    %3 = memref.load %arg4[%2] : memref<8xf32, #tpu.memory_space<smem>>
    %c0 = arith.constant 0 : index
    %c0_0 = arith.constant 0 : index
    %c0_1 = arith.constant 0 : index
    %c0_2 = arith.constant 0 : index
    %4 = vector.load %arg1[%c0, %c0_0, %c0_1, %c0_2] : memref<1x8x16x128xf32, #tpu.memory_space<vmem>>, vector<1x8x16x128xf32>
    %5 = vector.shape_cast %4 : vector<1x8x16x128xf32> to vector<8x16x128xf32>
    %c0_3 = arith.constant 0 : index
    %c0_4 = arith.constant 0 : index
    %c0_5 = arith.constant 0 : index
    %c0_6 = arith.constant 0 : index
    %6 = vector.load %arg2[%c0_3, %c0_4, %c0_5, %c0_6] : memref<1x8x16x128xf32, #tpu.memory_space<vmem>>, vector<1x8x16x128xf32>
    %7 = vector.shape_cast %6 : vector<1x8x16x128xf32> to vector<8x16x128xf32>
    %cst = arith.constant dense<0.000000e+00> : vector<128xf32>
    %8 = vector.multi_reduction <add>, %5, %cst [0, 1] : vector<8x16x128xf32> to vector<128xf32>
    %9 = vector.shape_cast %8 : vector<128xf32> to vector<1x1x128xf32>
    %cst_7 = arith.constant dense<0.000000e+00> : vector<1x1xf32>
    %10 = vector.multi_reduction <add>, %9, %cst_7 [2] : vector<1x1x128xf32> to vector<1x1xf32>
    %11 = vector.shape_cast %10 : vector<1x1xf32> to vector<1x1x1xf32>
    %cst_8 = arith.constant dense<0.000000e+00> : vector<128xf32>
    %12 = vector.multi_reduction <add>, %7, %cst_8 [0, 1] : vector<8x16x128xf32> to vector<128xf32>
    %13 = vector.shape_cast %12 : vector<128xf32> to vector<1x1x128xf32>
    %cst_9 = arith.constant dense<0.000000e+00> : vector<1x1xf32>
    %14 = vector.multi_reduction <add>, %13, %cst_9 [2] : vector<1x1x128xf32> to vector<1x1xf32>
    %15 = vector.shape_cast %14 : vector<1x1xf32> to vector<1x1x1xf32>
    %16 = arith.addf %11, %15 : vector<1x1x1xf32>
    %cst_10 = arith.constant 6.10351563E-5 : f32
    %17 = vector.broadcast %cst_10 : f32 to vector<1x1x1xf32>
    %18 = arith.mulf %16, %17 : vector<1x1x1xf32>
    %cst_11 = arith.constant 0.000000e+00 : f32
    %19 = vector.broadcast %cst_11 : f32 to vector<8x16x128xf32>
    %20 = vector.extract_strided_slice %5 {offsets = [0, 0, 0], sizes = [7, 16, 128], strides = [1, 1, 1]} : vector<8x16x128xf32> to vector<7x16x128xf32>
    %21 = vector.extract_strided_slice %7 {offsets = [1, 0, 0], sizes = [7, 16, 128], strides = [1, 1, 1]} : vector<8x16x128xf32> to vector<7x16x128xf32>
    %22 = arith.addf %20, %21 : vector<7x16x128xf32>
    %23 = vector.extract_strided_slice %5 {offsets = [7, 0, 0], sizes = [1, 16, 128], strides = [1, 1, 1]} : vector<8x16x128xf32> to vector<1x16x128xf32>
    %24 = vector.extract_strided_slice %7 {offsets = [0, 0, 0], sizes = [1, 16, 128], strides = [1, 1, 1]} : vector<8x16x128xf32> to vector<1x16x128xf32>
    %25 = arith.addf %23, %24 : vector<1x16x128xf32>
    %26 = tpu.concatenate %22, %25 in 0 : vector<7x16x128xf32>, vector<1x16x128xf32> -> vector<8x16x128xf32>
    %27 = arith.mulf %26, %26 : vector<8x16x128xf32>
    %cst_12 = arith.constant dense<0.000000e+00> : vector<128xf32>
    %28 = vector.multi_reduction <add>, %27, %cst_12 [0, 1] : vector<8x16x128xf32> to vector<128xf32>
    %29 = vector.shape_cast %28 : vector<128xf32> to vector<1x1x128xf32>
    %cst_13 = arith.constant dense<0.000000e+00> : vector<1x1xf32>
    %30 = vector.multi_reduction <add>, %29, %cst_13 [2] : vector<1x1x128xf32> to vector<1x1xf32>
    %31 = vector.shape_cast %30 : vector<1x1xf32> to vector<1x1x1xf32>
    %cst_14 = arith.constant 6.10351563E-5 : f32
    %32 = vector.broadcast %cst_14 : f32 to vector<1x1x1xf32>
    %33 = arith.mulf %31, %32 : vector<1x1x1xf32>
    %34 = arith.mulf %18, %18 : vector<1x1x1xf32>
    %35 = arith.subf %33, %34 : vector<1x1x1xf32>
    %cst_15 = arith.constant 9.99999974E-6 : f32
    %36 = vector.broadcast %cst_15 : f32 to vector<1x1x1xf32>
    %37 = arith.addf %35, %36 : vector<1x1x1xf32>
    %38 = math.rsqrt %37 : vector<1x1x1xf32>
    %39 = vector.broadcast %1 : f32 to vector<1x1x1xf32>
    %40 = arith.mulf %38, %39 : vector<1x1x1xf32>
    %41 = arith.mulf %18, %40 : vector<1x1x1xf32>
    %42 = vector.broadcast %3 : f32 to vector<1x1x1xf32>
    %43 = arith.subf %42, %41 : vector<1x1x1xf32>
    %44 = vector.broadcast %40 : vector<1x1x1xf32> to vector<8x16x128xf32>
    %45 = arith.mulf %26, %44 : vector<8x16x128xf32>
    %46 = vector.broadcast %43 : vector<1x1x1xf32> to vector<8x16x128xf32>
    %47 = arith.addf %45, %46 : vector<8x16x128xf32>
    %cst_16 = arith.constant 0.000000e+00 : f32
    %48 = vector.broadcast %cst_16 : f32 to vector<8x16x128xf32>
    %49 = arith.cmpf oge, %47, %48 : vector<8x16x128xf32>
    %cst_17 = arith.constant 0.00999999977 : f32
    %50 = vector.broadcast %cst_17 : f32 to vector<8x16x128xf32>
    %51 = arith.mulf %50, %47 : vector<8x16x128xf32>
    %52 = arith.select %49, %47, %51 : vector<8x16x128xi1>, vector<8x16x128xf32>
    %53 = arith.maximumf %19, %52 : vector<8x16x128xf32>
    %54 = vector.extract_strided_slice %5 {offsets = [0, 0, 0], sizes = [1, 16, 128], strides = [1, 1, 1]} : vector<8x16x128xf32> to vector<1x16x128xf32>
    %55 = vector.extract_strided_slice %7 {offsets = [7, 0, 0], sizes = [1, 16, 128], strides = [1, 1, 1]} : vector<8x16x128xf32> to vector<1x16x128xf32>
    %56 = arith.addf %54, %55 : vector<1x16x128xf32>
    %57 = vector.extract_strided_slice %5 {offsets = [1, 0, 0], sizes = [7, 16, 128], strides = [1, 1, 1]} : vector<8x16x128xf32> to vector<7x16x128xf32>
    %58 = vector.extract_strided_slice %7 {offsets = [0, 0, 0], sizes = [7, 16, 128], strides = [1, 1, 1]} : vector<8x16x128xf32> to vector<7x16x128xf32>
    %59 = arith.addf %57, %58 : vector<7x16x128xf32>
    %60 = tpu.concatenate %56, %59 in 0 : vector<1x16x128xf32>, vector<7x16x128xf32> -> vector<8x16x128xf32>
    %61 = arith.mulf %60, %60 : vector<8x16x128xf32>
    %cst_18 = arith.constant dense<0.000000e+00> : vector<128xf32>
    %62 = vector.multi_reduction <add>, %61, %cst_18 [0, 1] : vector<8x16x128xf32> to vector<128xf32>
    %63 = vector.shape_cast %62 : vector<128xf32> to vector<1x1x128xf32>
    %cst_19 = arith.constant dense<0.000000e+00> : vector<1x1xf32>
    %64 = vector.multi_reduction <add>, %63, %cst_19 [2] : vector<1x1x128xf32> to vector<1x1xf32>
    %65 = vector.shape_cast %64 : vector<1x1xf32> to vector<1x1x1xf32>
    %cst_20 = arith.constant 6.10351563E-5 : f32
    %66 = vector.broadcast %cst_20 : f32 to vector<1x1x1xf32>
    %67 = arith.mulf %65, %66 : vector<1x1x1xf32>
    %68 = arith.mulf %18, %18 : vector<1x1x1xf32>
    %69 = arith.subf %67, %68 : vector<1x1x1xf32>
    %cst_21 = arith.constant 9.99999974E-6 : f32
    %70 = vector.broadcast %cst_21 : f32 to vector<1x1x1xf32>
    %71 = arith.addf %69, %70 : vector<1x1x1xf32>
    %72 = math.rsqrt %71 : vector<1x1x1xf32>
    %73 = vector.broadcast %1 : f32 to vector<1x1x1xf32>
    %74 = arith.mulf %72, %73 : vector<1x1x1xf32>
    %75 = arith.mulf %18, %74 : vector<1x1x1xf32>
    %76 = vector.broadcast %3 : f32 to vector<1x1x1xf32>
    %77 = arith.subf %76, %75 : vector<1x1x1xf32>
    %78 = vector.broadcast %74 : vector<1x1x1xf32> to vector<8x16x128xf32>
    %79 = arith.mulf %60, %78 : vector<8x16x128xf32>
    %80 = vector.broadcast %77 : vector<1x1x1xf32> to vector<8x16x128xf32>
    %81 = arith.addf %79, %80 : vector<8x16x128xf32>
    %cst_22 = arith.constant 0.000000e+00 : f32
    %82 = vector.broadcast %cst_22 : f32 to vector<8x16x128xf32>
    %83 = arith.cmpf oge, %81, %82 : vector<8x16x128xf32>
    %cst_23 = arith.constant 0.00999999977 : f32
    %84 = vector.broadcast %cst_23 : f32 to vector<8x16x128xf32>
    %85 = arith.mulf %84, %81 : vector<8x16x128xf32>
    %86 = arith.select %83, %81, %85 : vector<8x16x128xi1>, vector<8x16x128xf32>
    %87 = arith.maximumf %53, %86 : vector<8x16x128xf32>
    %88 = vector.extract_strided_slice %5 {offsets = [0, 0, 0], sizes = [8, 15, 128], strides = [1, 1, 1]} : vector<8x16x128xf32> to vector<8x15x128xf32>
    %89 = vector.extract_strided_slice %7 {offsets = [0, 1, 0], sizes = [8, 15, 128], strides = [1, 1, 1]} : vector<8x16x128xf32> to vector<8x15x128xf32>
    %90 = arith.addf %88, %89 : vector<8x15x128xf32>
    %91 = vector.extract_strided_slice %5 {offsets = [0, 15, 0], sizes = [8, 1, 128], strides = [1, 1, 1]} : vector<8x16x128xf32> to vector<8x1x128xf32>
    %92 = vector.extract_strided_slice %7 {offsets = [0, 0, 0], sizes = [8, 1, 128], strides = [1, 1, 1]} : vector<8x16x128xf32> to vector<8x1x128xf32>
    %93 = arith.addf %91, %92 : vector<8x1x128xf32>
    %94 = tpu.concatenate %90, %93 in 1 : vector<8x15x128xf32>, vector<8x1x128xf32> -> vector<8x16x128xf32>
    %95 = arith.mulf %94, %94 : vector<8x16x128xf32>
    %cst_24 = arith.constant dense<0.000000e+00> : vector<128xf32>
    %96 = vector.multi_reduction <add>, %95, %cst_24 [0, 1] : vector<8x16x128xf32> to vector<128xf32>
    %97 = vector.shape_cast %96 : vector<128xf32> to vector<1x1x128xf32>
    %cst_25 = arith.constant dense<0.000000e+00> : vector<1x1xf32>
    %98 = vector.multi_reduction <add>, %97, %cst_25 [2] : vector<1x1x128xf32> to vector<1x1xf32>
    %99 = vector.shape_cast %98 : vector<1x1xf32> to vector<1x1x1xf32>
    %cst_26 = arith.constant 6.10351563E-5 : f32
    %100 = vector.broadcast %cst_26 : f32 to vector<1x1x1xf32>
    %101 = arith.mulf %99, %100 : vector<1x1x1xf32>
    %102 = arith.mulf %18, %18 : vector<1x1x1xf32>
    %103 = arith.subf %101, %102 : vector<1x1x1xf32>
    %cst_27 = arith.constant 9.99999974E-6 : f32
    %104 = vector.broadcast %cst_27 : f32 to vector<1x1x1xf32>
    %105 = arith.addf %103, %104 : vector<1x1x1xf32>
    %106 = math.rsqrt %105 : vector<1x1x1xf32>
    %107 = vector.broadcast %1 : f32 to vector<1x1x1xf32>
    %108 = arith.mulf %106, %107 : vector<1x1x1xf32>
    %109 = arith.mulf %18, %108 : vector<1x1x1xf32>
    %110 = vector.broadcast %3 : f32 to vector<1x1x1xf32>
    %111 = arith.subf %110, %109 : vector<1x1x1xf32>
    %112 = vector.broadcast %108 : vector<1x1x1xf32> to vector<8x16x128xf32>
    %113 = arith.mulf %94, %112 : vector<8x16x128xf32>
    %114 = vector.broadcast %111 : vector<1x1x1xf32> to vector<8x16x128xf32>
    %115 = arith.addf %113, %114 : vector<8x16x128xf32>
    %cst_28 = arith.constant 0.000000e+00 : f32
    %116 = vector.broadcast %cst_28 : f32 to vector<8x16x128xf32>
    %117 = arith.cmpf oge, %115, %116 : vector<8x16x128xf32>
    %cst_29 = arith.constant 0.00999999977 : f32
    %118 = vector.broadcast %cst_29 : f32 to vector<8x16x128xf32>
    %119 = arith.mulf %118, %115 : vector<8x16x128xf32>
    %120 = arith.select %117, %115, %119 : vector<8x16x128xi1>, vector<8x16x128xf32>
    %121 = arith.maximumf %87, %120 : vector<8x16x128xf32>
    %122 = vector.extract_strided_slice %5 {offsets = [0, 0, 0], sizes = [8, 1, 128], strides = [1, 1, 1]} : vector<8x16x128xf32> to vector<8x1x128xf32>
    %123 = vector.extract_strided_slice %7 {offsets = [0, 15, 0], sizes = [8, 1, 128], strides = [1, 1, 1]} : vector<8x16x128xf32> to vector<8x1x128xf32>
    %124 = arith.addf %122, %123 : vector<8x1x128xf32>
    %125 = vector.extract_strided_slice %5 {offsets = [0, 1, 0], sizes = [8, 15, 128], strides = [1, 1, 1]} : vector<8x16x128xf32> to vector<8x15x128xf32>
    %126 = vector.extract_strided_slice %7 {offsets = [0, 0, 0], sizes = [8, 15, 128], strides = [1, 1, 1]} : vector<8x16x128xf32> to vector<8x15x128xf32>
    %127 = arith.addf %125, %126 : vector<8x15x128xf32>
    %128 = tpu.concatenate %124, %127 in 1 : vector<8x1x128xf32>, vector<8x15x128xf32> -> vector<8x16x128xf32>
    %129 = arith.mulf %128, %128 : vector<8x16x128xf32>
    %cst_30 = arith.constant dense<0.000000e+00> : vector<128xf32>
    %130 = vector.multi_reduction <add>, %129, %cst_30 [0, 1] : vector<8x16x128xf32> to vector<128xf32>
    %131 = vector.shape_cast %130 : vector<128xf32> to vector<1x1x128xf32>
    %cst_31 = arith.constant dense<0.000000e+00> : vector<1x1xf32>
    %132 = vector.multi_reduction <add>, %131, %cst_31 [2] : vector<1x1x128xf32> to vector<1x1xf32>
    %133 = vector.shape_cast %132 : vector<1x1xf32> to vector<1x1x1xf32>
    %cst_32 = arith.constant 6.10351563E-5 : f32
    %134 = vector.broadcast %cst_32 : f32 to vector<1x1x1xf32>
    %135 = arith.mulf %133, %134 : vector<1x1x1xf32>
    %136 = arith.mulf %18, %18 : vector<1x1x1xf32>
    %137 = arith.subf %135, %136 : vector<1x1x1xf32>
    %cst_33 = arith.constant 9.99999974E-6 : f32
    %138 = vector.broadcast %cst_33 : f32 to vector<1x1x1xf32>
    %139 = arith.addf %137, %138 : vector<1x1x1xf32>
    %140 = math.rsqrt %139 : vector<1x1x1xf32>
    %141 = vector.broadcast %1 : f32 to vector<1x1x1xf32>
    %142 = arith.mulf %140, %141 : vector<1x1x1xf32>
    %143 = arith.mulf %18, %142 : vector<1x1x1xf32>
    %144 = vector.broadcast %3 : f32 to vector<1x1x1xf32>
    %145 = arith.subf %144, %143 : vector<1x1x1xf32>
    %146 = vector.broadcast %142 : vector<1x1x1xf32> to vector<8x16x128xf32>
    %147 = arith.mulf %128, %146 : vector<8x16x128xf32>
    %148 = vector.broadcast %145 : vector<1x1x1xf32> to vector<8x16x128xf32>
    %149 = arith.addf %147, %148 : vector<8x16x128xf32>
    %cst_34 = arith.constant 0.000000e+00 : f32
    %150 = vector.broadcast %cst_34 : f32 to vector<8x16x128xf32>
    %151 = arith.cmpf oge, %149, %150 : vector<8x16x128xf32>
    %cst_35 = arith.constant 0.00999999977 : f32
    %152 = vector.broadcast %cst_35 : f32 to vector<8x16x128xf32>
    %153 = arith.mulf %152, %149 : vector<8x16x128xf32>
    %154 = arith.select %151, %149, %153 : vector<8x16x128xi1>, vector<8x16x128xf32>
    %155 = arith.maximumf %121, %154 : vector<8x16x128xf32>
    %c127_i32 = arith.constant 127 : i32
    %156 = tpu.dynamic_rotate %7 by %c127_i32 dim 2 : vector<8x16x128xf32>, i32 -> vector<8x16x128xf32>
    %157 = arith.addf %5, %156 : vector<8x16x128xf32>
    %158 = arith.mulf %157, %157 : vector<8x16x128xf32>
    %cst_36 = arith.constant dense<0.000000e+00> : vector<128xf32>
    %159 = vector.multi_reduction <add>, %158, %cst_36 [0, 1] : vector<8x16x128xf32> to vector<128xf32>
    %160 = vector.shape_cast %159 : vector<128xf32> to vector<1x1x128xf32>
    %cst_37 = arith.constant dense<0.000000e+00> : vector<1x1xf32>
    %161 = vector.multi_reduction <add>, %160, %cst_37 [2] : vector<1x1x128xf32> to vector<1x1xf32>
    %162 = vector.shape_cast %161 : vector<1x1xf32> to vector<1x1x1xf32>
    %cst_38 = arith.constant 6.10351563E-5 : f32
    %163 = vector.broadcast %cst_38 : f32 to vector<1x1x1xf32>
    %164 = arith.mulf %162, %163 : vector<1x1x1xf32>
    %165 = arith.mulf %18, %18 : vector<1x1x1xf32>
    %166 = arith.subf %164, %165 : vector<1x1x1xf32>
    %cst_39 = arith.constant 9.99999974E-6 : f32
    %167 = vector.broadcast %cst_39 : f32 to vector<1x1x1xf32>
    %168 = arith.addf %166, %167 : vector<1x1x1xf32>
    %169 = math.rsqrt %168 : vector<1x1x1xf32>
    %170 = vector.broadcast %1 : f32 to vector<1x1x1xf32>
    %171 = arith.mulf %169, %170 : vector<1x1x1xf32>
    %172 = arith.mulf %18, %171 : vector<1x1x1xf32>
    %173 = vector.broadcast %3 : f32 to vector<1x1x1xf32>
    %174 = arith.subf %173, %172 : vector<1x1x1xf32>
    %175 = vector.broadcast %171 : vector<1x1x1xf32> to vector<8x16x128xf32>
    %176 = arith.mulf %157, %175 : vector<8x16x128xf32>
    %177 = vector.broadcast %174 : vector<1x1x1xf32> to vector<8x16x128xf32>
    %178 = arith.addf %176, %177 : vector<8x16x128xf32>
    %cst_40 = arith.constant 0.000000e+00 : f32
    %179 = vector.broadcast %cst_40 : f32 to vector<8x16x128xf32>
    %180 = arith.cmpf oge, %178, %179 : vector<8x16x128xf32>
    %cst_41 = arith.constant 0.00999999977 : f32
    %181 = vector.broadcast %cst_41 : f32 to vector<8x16x128xf32>
    %182 = arith.mulf %181, %178 : vector<8x16x128xf32>
    %183 = arith.select %180, %178, %182 : vector<8x16x128xi1>, vector<8x16x128xf32>
    %184 = arith.maximumf %155, %183 : vector<8x16x128xf32>
    %c1_i32 = arith.constant 1 : i32
    %185 = tpu.dynamic_rotate %7 by %c1_i32 dim 2 : vector<8x16x128xf32>, i32 -> vector<8x16x128xf32>
    %186 = arith.addf %5, %185 : vector<8x16x128xf32>
    %187 = arith.mulf %186, %186 : vector<8x16x128xf32>
    %cst_42 = arith.constant dense<0.000000e+00> : vector<128xf32>
    %188 = vector.multi_reduction <add>, %187, %cst_42 [0, 1] : vector<8x16x128xf32> to vector<128xf32>
    %189 = vector.shape_cast %188 : vector<128xf32> to vector<1x1x128xf32>
    %cst_43 = arith.constant dense<0.000000e+00> : vector<1x1xf32>
    %190 = vector.multi_reduction <add>, %189, %cst_43 [2] : vector<1x1x128xf32> to vector<1x1xf32>
    %191 = vector.shape_cast %190 : vector<1x1xf32> to vector<1x1x1xf32>
    %cst_44 = arith.constant 6.10351563E-5 : f32
    %192 = vector.broadcast %cst_44 : f32 to vector<1x1x1xf32>
    %193 = arith.mulf %191, %192 : vector<1x1x1xf32>
    %194 = arith.mulf %18, %18 : vector<1x1x1xf32>
    %195 = arith.subf %193, %194 : vector<1x1x1xf32>
    %cst_45 = arith.constant 9.99999974E-6 : f32
    %196 = vector.broadcast %cst_45 : f32 to vector<1x1x1xf32>
    %197 = arith.addf %195, %196 : vector<1x1x1xf32>
    %198 = math.rsqrt %197 : vector<1x1x1xf32>
    %199 = vector.broadcast %1 : f32 to vector<1x1x1xf32>
    %200 = arith.mulf %198, %199 : vector<1x1x1xf32>
    %201 = arith.mulf %18, %200 : vector<1x1x1xf32>
    %202 = vector.broadcast %3 : f32 to vector<1x1x1xf32>
    %203 = arith.subf %202, %201 : vector<1x1x1xf32>
    %204 = vector.broadcast %200 : vector<1x1x1xf32> to vector<8x16x128xf32>
    %205 = arith.mulf %186, %204 : vector<8x16x128xf32>
    %206 = vector.broadcast %203 : vector<1x1x1xf32> to vector<8x16x128xf32>
    %207 = arith.addf %205, %206 : vector<8x16x128xf32>
    %cst_46 = arith.constant 0.000000e+00 : f32
    %208 = vector.broadcast %cst_46 : f32 to vector<8x16x128xf32>
    %209 = arith.cmpf oge, %207, %208 : vector<8x16x128xf32>
    %cst_47 = arith.constant 0.00999999977 : f32
    %210 = vector.broadcast %cst_47 : f32 to vector<8x16x128xf32>
    %211 = arith.mulf %210, %207 : vector<8x16x128xf32>
    %212 = arith.select %209, %207, %211 : vector<8x16x128xi1>, vector<8x16x128xf32>
    %213 = arith.maximumf %184, %212 : vector<8x16x128xf32>
    %c0_48 = arith.constant 0 : index
    %c0_49 = arith.constant 0 : index
    %c0_50 = arith.constant 0 : index
    %c0_51 = arith.constant 0 : index
    %214 = vector.load %arg5[%c0_48, %c0_49, %c0_50, %c0_51] : memref<1x8x16x128xf32, #tpu.memory_space<vmem>>, vector<1x8x16x128xf32>
    %215 = vector.shape_cast %214 : vector<1x8x16x128xf32> to vector<8x16x128xf32>
    %216 = vector.shape_cast %213 : vector<8x16x128xf32> to vector<1x8x16x128xf32>
    tpu.vector_store %arg5[%c0_48, %c0_49, %c0_50, %c0_51], %216 {strides = array<i32>} : memref<1x8x16x128xf32, #tpu.memory_space<vmem>>, vector<1x8x16x128xf32>,
    return
  }
  func.func @transform_0(%arg0: i32) -> (i32, i32, i32, i32) {
    %c0_i32 = arith.constant 0 : i32
    %c0_i32_0 = arith.constant 0 : i32
    %c0_i32_1 = arith.constant 0 : i32
    %c0_i32_2 = arith.constant 0 : i32
    return %arg0, %c0_i32, %c0_i32_0, %c0_i32_1 : i32, i32, i32, i32
  }
  func.func @transform_1(%arg0: i32) -> (i32, i32, i32, i32) {
    %c0_i32 = arith.constant 0 : i32
    %c0_i32_0 = arith.constant 0 : i32
    %c0_i32_1 = arith.constant 0 : i32
    %c0_i32_2 = arith.constant 0 : i32
    return %arg0, %c0_i32, %c0_i32_0, %c0_i32_1 : i32, i32, i32, i32
  }
  func.func @transform_2(%arg0: i32) -> i32 {
    %c0_i32 = arith.constant 0 : i32
    %c0_i32_0 = arith.constant 0 : i32
    return %c0_i32 : i32
  }
  func.func @transform_3(%arg0: i32) -> i32 {
    %c0_i32 = arith.constant 0 : i32
    %c0_i32_0 = arith.constant 0 : i32
    return %c0_i32 : i32
  }
  func.func @transform_4(%arg0: i32) -> (i32, i32, i32, i32) {
    %c0_i32 = arith.constant 0 : i32
    %c0_i32_0 = arith.constant 0 : i32
    %c0_i32_1 = arith.constant 0 : i32
    %c0_i32_2 = arith.constant 0 : i32
    return %arg0, %c0_i32, %c0_i32_0, %c0_i32_1 : i32, i32, i32, i32
  }
}

</mosaic_0001>

<llo_original>
// kernel: tile.13
$region0: #{tile.13}
  #allocation0 [shape = 's32[1]{0}', space=sflag, size = 0x4, scoped, tag = 'scoped memory for tile.13']
  %s0 = inlined_call_operand.vmem [shape: f32[4], index: 0, kind: input, shape index: {}]
  %s1 = inlined_call_operand.vmem [shape: f32[2,4], index: 1, kind: output, shape index: {}]
  // Predicated region
  $region2: #{tile.13} parent=0 // pred_check
    _
  $region3: #{tile.13} parent=0 // pred_check_branch
    %3 = sbr.rel (0) target = $region5
  $region4: #{tile.13} parent=0 // pred_region
    _
  $region5: #{tile.13} parent=0 // pred_fallthru
    _
  %v4 = vld [vmem:[%s0] ss:$0 sm:$0xff]
  %5 = vst [vmem:[%s1] sm:$0x3] %v4

// kernel: tile.14
$region0: #{tile.14}
  %s0 = inlined_call_operand.vmem [shape: f32[2,4], index: 0, kind: input, shape index: {}]
  %s1 = inlined_call_operand.vmem [shape: f32[8], index: 1, kind: output, shape index: {}]
  $region1: #{tile.14} parent=0
    #allocation0 [shape = 'u8[4096]{0}', space=vmem, size = 0x1000, scoped, tag = 'scoped mem for output reshape']
    #allocation1 [shape = 'u8[4096]{0}', space=vmem, size = 0x1000, scoped, tag = 'scoped mem for input reshape']
    %s3 = sshllo.u32 0, 2
    %v4 = vld [vmem:[%s0] sm:%s3]
    %5 = vst [vmem:[#allocation1] sm:%s3] %v4
    %v6 = vld [vmem:[#allocation1] sm:$0x1]
    %vm7 = vcmask 31744
    %8 = vst.msk [vmem:[#allocation0] sm:$0x1] %vm7, %v6
    %s9 = scalar_lea.vmem [#allocation1], 1
    %v10 = vld [vmem:[%s9] sm:$0x1]
    %11 = vrot.lane.b32.xlu0 %v10, 4
    %v12 = vpop.permute.xlu0 %11
    %vm13 = vcmask 64544
    %14 = vst.msk [vmem:[#allocation0] sm:$0x1] %vm13, %v12
    %s16 = sshllo.u32 0, 1
    %v18 = vld [vmem:[#allocation0] sm:%s16]
    %s19 = sshllo.u32 0, 1
    %20 = vst [vmem:[%s1] sm:%s19] %v18

// kernel: unroll_max.1
$region0: #{unroll_max.1}
  #allocation0 [shape = 'u32[]', space=smem, size = 0x4, offset = 0x4, fixed_abs, tag = 'smem constant byte address 0x4 - core index']
  #allocation1 [shape = 'u32[144,128]{1,0:T(1,128)}', space=vmem, size = 0x12000, scoped, tag = 'internal scratch']
  %s0 = inlined_call_operand.hbm [shape: f32[8,8,16,128], index: 0, kind: input, shape index: {}]
  %s1 = inlined_call_operand.hbm [shape: f32[8,8,16,128], index: 1, kind: input, shape index: {}]
  %s2 = inlined_call_operand.vmem [shape: f32[8], index: 2, kind: input, shape index: {}]
  %s3 = inlined_call_operand.vmem [shape: f32[8], index: 3, kind: input, shape index: {}]
  %s4 = inlined_call_operand.hbm [shape: f32[8,8,16,128], index: 4, kind: output, shape index: {}]
  %s5 = sld [smem:[#allocation0]]
  $region65: #{unroll_max.1} parent=0
    _
  %s7 = ssub.s32 1, %s5
  %s8 = scalar_select 0, %s7, %s5
  $region1: #{unroll_max.1} parent=0
    #allocation2 [shape = 'u8[131072]{0}', space=vmem, size = 0x20000, scoped, tag = 'input window, operand 0']
    #allocation3 [shape = 's32[2]{0}', space=sflag, size = 0x8, scoped, tag = 'scoped memory for unroll_max.1']
    #allocation4 [shape = 's32[2]{0}', space=sflag, size = 0x8, scoped, tag = 'scoped memory for unroll_max.1']
    #allocation5 [shape = 's32[2]{0}', space=sflag, size = 0x8, scoped, tag = 'scoped memory for unroll_max.1']
    #allocation6 [shape = 'u8[131072]{0}', space=vmem, size = 0x20000, scoped, tag = 'input window, operand 1']
    #allocation7 [shape = 's32[2]{0}', space=sflag, size = 0x8, scoped, tag = 'scoped memory for unroll_max.1']
    #allocation8 [shape = 'u8[512]{0}', space=smem, size = 0x200, scoped, tag = 'input window, operand 2, single buffered']
    #allocation9 [shape = 'u8[512]{0}', space=smem, size = 0x200, scoped, tag = 'input window, operand 3, single buffered']
    #allocation10 [shape = 's32[1]{0}', space=sflag, size = 0x4, scoped, tag = 'scoped memory for unroll_max.1']
    #allocation11 [shape = 'u8[131072]{0}', space=vmem, size = 0x20000, scoped, tag = 'output window, operand 0']
    %9 = vsyncpa [#allocation3], 0
    %s10 = scalar_lea.sflag [#allocation3], 1
    %11 = vsyncpa %s10, 0
    %12 = vsyncpa [#allocation7], 0
    %s13 = scalar_lea.sflag [#allocation7], 1
    %14 = vsyncpa %s13, 0
    %15 = vsyncpa [#allocation5], 0
    %16 = vsyncpa [#allocation10], 0
    %17 = vsyncpa [#allocation4], 0
    %s18 = scalar_lea.sflag [#allocation4], 1
    %19 = vsyncpa %s18, 0
    loop: start=0, step=1, limit=10
    $region2: #{unroll_max.1} parent=1 // loop_pre_header
      _
    $region3: #{unroll_max.1} parent=1 // loop_header
      %s21 = sphi 0, %s25
      %p22 = scmp.ge.s32.totalorder %s21, 10
      %s31 = sphi 0, %s33
      %s34 = sphi 0, %s31
      %s35 = sphi 0, %s34
      %s51 = sphi 0, %s35
      %s57 = sphi 0, %s59
      %s60 = sphi 0, %s57
      %s61 = sphi 0, %s60
      %s77 = sphi 0, %s61
      %s81 = sphi 0, %s81
      %s83 = sphi 0, %s81
      %s84 = sphi 0, %s83
      %s98 = sphi 0, %s84
      %s102 = sphi 0, %s102
      %s104 = sphi 0, %s102
      %s105 = sphi 0, %s104
      %s119 = sphi 0, %s105
      %s125 = sphi 0, %s127
      %s128 = sphi 0, %s125
      %s129 = sphi 0, %s128
      %s145 = sphi 0, %s129
    $region4: #{unroll_max.1} parent=1 // loop_header_branch
      %24 = sbr.rel (%p22) target = $region8
    $region5: #{unroll_max.1} parent=1 // loop_body
      %s26 = ssub.s32 %s21, 1
      %s27 = ssub.s32 %s21, 2
      %s28 = sadd.s32 %s21, 1
      %s29 = ssub.s32 %s21, %s28
      %p30 = scmp.eq.s32.totalorder %s29, 0
      %s32 = sadd.s32 %s31, 1
      %s33 = scalar_select %p30, %s31, %s32
      %p36 = pneg %p30
      %p37 = scmp.eq.s32.totalorder %s21, 7
      %p38 = por %p36, %p37
      %p39 = scmp.ne.s32.totalorder %s31, %s34
      %p40 = scmp.eq.s32.totalorder %s21, 0
      %p41 = por %p39, %p40
      %p42 = scmp.ne.s32.totalorder %s31, %s34
      %p43 = scmp.eq.s32.totalorder %s26, 7
      %p44 = por %p42, %p43
      %p45 = scmp.ne.s32.totalorder %s34, %s35
      %p46 = scmp.eq.s32.totalorder %s26, 0
      %p47 = por %p45, %p46
      %p48 = scmp.ne.s32.totalorder %s34, %s35
      %p49 = scmp.eq.s32.totalorder %s27, 7
      %p50 = por %p48, %p49
      %p52 = scmp.ne.s32.totalorder %s35, %s51
      %p53 = scmp.eq.s32.totalorder %s27, 0
      %p54 = por %p52, %p53
      %s55 = ssub.s32 %s21, %s28
      %p56 = scmp.eq.s32.totalorder %s55, 0
      %s58 = sadd.s32 %s57, 1
      %s59 = scalar_select %p56, %s57, %s58
      %p62 = pneg %p56
      %p63 = scmp.eq.s32.totalorder %s21, 7
      %p64 = por %p62, %p63
      %p65 = scmp.ne.s32.totalorder %s57, %s60
      %p66 = scmp.eq.s32.totalorder %s21, 0
      %p67 = por %p65, %p66
      %p68 = scmp.ne.s32.totalorder %s57, %s60
      %p69 = scmp.eq.s32.totalorder %s26, 7
      %p70 = por %p68, %p69
      %p71 = scmp.ne.s32.totalorder %s60, %s61
      %p72 = scmp.eq.s32.totalorder %s26, 0
      %p73 = por %p71, %p72
      %p74 = scmp.ne.s32.totalorder %s60, %s61
      %p75 = scmp.eq.s32.totalorder %s27, 7
      %p76 = por %p74, %p75
      %p78 = scmp.ne.s32.totalorder %s61, %s77
      %p79 = scmp.eq.s32.totalorder %s27, 0
      %p80 = por %p78, %p79
      %s82 = sadd.s32 %s81, 1
      %p85 = scmp.eq.s32.totalorder %s21, 7
      %p86 = scmp.ne.s32.totalorder %s81, %s83
      %p87 = scmp.eq.s32.totalorder %s21, 0
      %p88 = por %p86, %p87
      %p89 = scmp.ne.s32.totalorder %s81, %s83
      %p90 = scmp.eq.s32.totalorder %s26, 7
      %p91 = por %p89, %p90
      %p92 = scmp.ne.s32.totalorder %s83, %s84
      %p93 = scmp.eq.s32.totalorder %s26, 0
      %p94 = por %p92, %p93
      %p95 = scmp.ne.s32.totalorder %s83, %s84
      %p96 = scmp.eq.s32.totalorder %s27, 7
      %p97 = por %p95, %p96
      %p99 = scmp.ne.s32.totalorder %s84, %s98
      %p100 = scmp.eq.s32.totalorder %s27, 0
      %p101 = por %p99, %p100
      %s103 = sadd.s32 %s102, 1
      %p106 = scmp.eq.s32.totalorder %s21, 7
      %p107 = scmp.ne.s32.totalorder %s102, %s104
      %p108 = scmp.eq.s32.totalorder %s21, 0
      %p109 = por %p107, %p108
      %p110 = scmp.ne.s32.totalorder %s102, %s104
      %p111 = scmp.eq.s32.totalorder %s26, 7
      %p112 = por %p110, %p111
      %p113 = scmp.ne.s32.totalorder %s104, %s105
      %p114 = scmp.eq.s32.totalorder %s26, 0
      %p115 = por %p113, %p114
      %p116 = scmp.ne.s32.totalorder %s104, %s105
      %p117 = scmp.eq.s32.totalorder %s27, 7
      %p118 = por %p116, %p117
      %p120 = scmp.ne.s32.totalorder %s105, %s119
      %p121 = scmp.eq.s32.totalorder %s27, 0
      %p122 = por %p120, %p121
      %s123 = ssub.s32 %s21, %s28
      %p124 = scmp.eq.s32.totalorder %s123, 0
      %s126 = sadd.s32 %s125, 1
      %s127 = scalar_select %p124, %s125, %s126
      %p130 = pneg %p124
      %p131 = scmp.eq.s32.totalorder %s21, 7
      %p132 = por %p130, %p131
      %p133 = scmp.ne.s32.totalorder %s125, %s128
      %p134 = scmp.eq.s32.totalorder %s21, 0
      %p135 = por %p133, %p134
      %p136 = scmp.ne.s32.totalorder %s125, %s128
      %p137 = scmp.eq.s32.totalorder %s26, 7
      %p138 = por %p136, %p137
      %p139 = scmp.ne.s32.totalorder %s128, %s129
      %p140 = scmp.eq.s32.totalorder %s26, 0
      %p141 = por %p139, %p140
      %p142 = scmp.ne.s32.totalorder %s128, %s129
      %p143 = scmp.eq.s32.totalorder %s27, 7
      %p144 = por %p142, %p143
      %p146 = scmp.ne.s32.totalorder %s129, %s145
      %p147 = scmp.eq.s32.totalorder %s27, 0
      %p148 = por %p146, %p147
      %p149 = scmp.le.s32.totalorder 1, %s21
      %p150 = scmp.lt.s32.totalorder %s21, 9
      %p151 = pnand %p149, %p150
      %p152 = pneg %p151
      // Predicated region
      $region9: #{unroll_max.1} parent=5 // pred_check
        _
      $region10: #{unroll_max.1} parent=5 // pred_check_branch
        %154 = sbr.rel (%p151) target = $region12
      $region11: #{unroll_max.1} parent=5 // pred_region
        %s155 = ssub.s32 %s21, 1
        // Predicated region
        $region13: #{unroll_max.1} parent=11 // pred_check
          %p156 = pneg %p94
        $region14: #{unroll_max.1} parent=11 // pred_check_branch
          %158 = sbr.rel (%p156) target = $region16
        $region15: #{unroll_max.1} parent=11 // pred_region
          %s160 = ssub.s32 16, 16
          %161 = vsyncadd [#allocation5], %s160
          %s163 = sshll.u32 %s2, 4
          %s164 = int_to_ptr.vmem [resolvable:$true] %s163
          %166 = dma.vmem_to_smem %s164, 16, [#allocation8], [#allocation5]
        $region16: #{unroll_max.1} parent=11 // pred_fallthru
          _
        // Predicated region
        $region17: #{unroll_max.1} parent=11 // pred_check
          %p167 = pneg %p115
        $region18: #{unroll_max.1} parent=11 // pred_check_branch
          %169 = sbr.rel (%p167) target = $region20
        $region19: #{unroll_max.1} parent=11 // pred_region
          %s171 = ssub.s32 16, 16
          %172 = vsyncadd [#allocation10], %s171
          %s174 = sshll.u32 %s3, 4
          %s175 = int_to_ptr.vmem [resolvable:$true] %s174
          %177 = dma.vmem_to_smem %s175, 16, [#allocation9], [#allocation10]
        $region20: #{unroll_max.1} parent=11 // pred_fallthru
          _
      $region12: #{unroll_max.1} parent=5 // pred_fallthru
        _
      %p178 = scmp.lt.s32.totalorder %s21, 8
      // Predicated region
      $region21: #{unroll_max.1} parent=5 // pred_check
        %p179 = pneg %p178
      $region22: #{unroll_max.1} parent=5 // pred_check_branch
        %181 = sbr.rel (%p179) target = $region24
      $region23: #{unroll_max.1} parent=5 // pred_region
        // Predicated region
        $region25: #{unroll_max.1} parent=23 // pred_check
          %p182 = pneg %p41
        $region26: #{unroll_max.1} parent=23 // pred_check_branch
          %184 = sbr.rel (%p182) target = $region28
        $region27: #{unroll_max.1} parent=23 // pred_region
          %s185 = sand.u32 %s31, 1
          %s186 = scalar_lea.sflag [#allocation3], %s185
          %s187 = sand.u32 %s31, 1
          %s188 = smul.addr %s187, 128
          %s189 = scalar_lea.vmem [#allocation2], %s188
          %s191 = ssub.s32 2048, 2048
          %192 = vsyncadd %s186, %s191
          %s193 = smul.addr %s21, 16
          %s194 = smul.addr %s193, 128
          %s195 = scalar_lea.hbm %s0, %s194
          %s196 = sshll.u32 %s189, 4
          %s197 = int_to_ptr.vmem [resolvable:$true] %s196
          %202 = dma.hbm_to_vmem [thread:$0]  %s195, 2048, %s197, %s186, 128, 128, 8
        $region28: #{unroll_max.1} parent=23 // pred_fallthru
          _
        // Predicated region
        $region29: #{unroll_max.1} parent=23 // pred_check
          %p203 = pneg %p67
        $region30: #{unroll_max.1} parent=23 // pred_check_branch
          %205 = sbr.rel (%p203) target = $region32
        $region31: #{unroll_max.1} parent=23 // pred_region
          %s206 = sand.u32 %s57, 1
          %s207 = scalar_lea.sflag [#allocation7], %s206
          %s208 = sand.u32 %s57, 1
          %s209 = smul.addr %s208, 128
          %s210 = scalar_lea.vmem [#allocation6], %s209
          %s212 = ssub.s32 2048, 2048
          %213 = vsyncadd %s207, %s212
          %s214 = smul.addr %s21, 16
          %s215 = smul.addr %s214, 128
          %s216 = scalar_lea.hbm %s1, %s215
          %s217 = sshll.u32 %s210, 4
          %s218 = int_to_ptr.vmem [resolvable:$true] %s217
          %223 = dma.hbm_to_vmem [thread:$0]  %s216, 2048, %s218, %s207, 128, 128, 8
        $region32: #{unroll_max.1} parent=23 // pred_fallthru
          _
      $region24: #{unroll_max.1} parent=5 // pred_fallthru
        _
      %p224 = scmp.le.s32.totalorder 1, %s21
      %p225 = scmp.lt.s32.totalorder %s21, 9
      %p226 = pnand %p224, %p225
      %p227 = pneg %p226
      // Predicated region
      $region33: #{unroll_max.1} parent=5 // pred_check
        _
      $region34: #{unroll_max.1} parent=5 // pred_check_branch
        %229 = sbr.rel (%p226) target = $region36
      $region35: #{unroll_max.1} parent=5 // pred_region
        %s230 = ssub.s32 %s21, 1
        %s231 = sand.u32 %s34, 1
        %s232 = scalar_lea.sflag [#allocation3], %s231
        %s233 = sand.u32 %s34, 1
        %s234 = smul.addr %s233, 128
        %s235 = scalar_lea.vmem [#allocation2], %s234
        // Predicated region
        $region37: #{unroll_max.1} parent=35 // pred_check
          %p236 = pneg %p47
        $region38: #{unroll_max.1} parent=35 // pred_check_branch
          %238 = sbr.rel (%p236) target = $region40
        $region39: #{unroll_max.1} parent=35 // pred_region
          %239 = dma.done %s232, 2048
        $region40: #{unroll_max.1} parent=35 // pred_fallthru
          _
        %s240 = sand.u32 %s60, 1
        %s241 = scalar_lea.sflag [#allocation7], %s240
        %s242 = sand.u32 %s60, 1
        %s243 = smul.addr %s242, 128
        %s244 = scalar_lea.vmem [#allocation6], %s243
        // Predicated region
        $region41: #{unroll_max.1} parent=35 // pred_check
          %p245 = pneg %p73
        $region42: #{unroll_max.1} parent=35 // pred_check_branch
          %247 = sbr.rel (%p245) target = $region44
        $region43: #{unroll_max.1} parent=35 // pred_region
          %248 = dma.done %s241, 2048
        $region44: #{unroll_max.1} parent=35 // pred_fallthru
          _
        // Predicated region
        $region45: #{unroll_max.1} parent=35 // pred_check
          %p249 = pneg %p94
        $region46: #{unroll_max.1} parent=35 // pred_check_branch
          %251 = sbr.rel (%p249) target = $region48
        $region47: #{unroll_max.1} parent=35 // pred_region
          %252 = dma.done [#allocation5], 16
        $region48: #{unroll_max.1} parent=35 // pred_fallthru
          _
        // Predicated region
        $region49: #{unroll_max.1} parent=35 // pred_check
          %p253 = pneg %p115
        $region50: #{unroll_max.1} parent=35 // pred_check_branch
          %255 = sbr.rel (%p253) target = $region52
        $region51: #{unroll_max.1} parent=35 // pred_region
          %256 = dma.done [#allocation10], 16
        $region52: #{unroll_max.1} parent=35 // pred_fallthru
          _
        %257 = sfence
        %s258 = sand.u32 %s34, 1
        %s259 = scalar_lea.sflag [#allocation3], %s258
        %s260 = sand.u32 %s34, 1
        %s261 = smul.addr %s260, 128
        %s262 = scalar_lea.vmem [#allocation2], %s261
        %p263 = pneg %p47
        %p264 = pneg %p44
        %s265 = sand.u32 %s60, 1
        %s266 = scalar_lea.sflag [#allocation7], %s265
        %s267 = sand.u32 %s60, 1
        %s268 = smul.addr %s267, 128
        %s269 = scalar_lea.vmem [#allocation6], %s268
        %p270 = pneg %p73
        %p271 = pneg %p70
        %p272 = pneg %p94
        %p273 = pneg %p91
        %p274 = pneg %p115
        %p275 = pneg %p112
        %p276 = pneg %p141
        %p277 = pneg %p138
        %s278 = sand.u32 %s128, 1
        %s279 = scalar_lea.sflag [#allocation4], %s278
        %s280 = sand.u32 %s128, 1
        %s281 = smul.addr %s280, 128
        %s282 = scalar_lea.vmem [#allocation11], %s281
        %s283 = sld [smem:[#allocation8 + %s26]]
        %s284 = sld [smem:[#allocation9 + %s26]]
        %v285 = vld [vmem:[%s235] sm:$0xff]
        %v286 = vld [vmem:[%s235 + $0x8] sm:$0xff]
        %v287 = vld [vmem:[%s235 + $0x10] sm:$0xff]
        %v288 = vld [vmem:[%s235 + $0x18] sm:$0xff]
        %v289 = vld [vmem:[%s235 + $0x20] sm:$0xff]
        %v290 = vld [vmem:[%s235 + $0x28] sm:$0xff]
        %v291 = vld [vmem:[%s235 + $0x30] sm:$0xff]
        %v292 = vld [vmem:[%s235 + $0x38] sm:$0xff]
        %v293 = vld [vmem:[%s235 + $0x40] sm:$0xff]
        %v294 = vld [vmem:[%s235 + $0x48] sm:$0xff]
        %v295 = vld [vmem:[%s235 + $0x50] sm:$0xff]
        %v296 = vld [vmem:[%s235 + $0x58] sm:$0xff]
        %v297 = vld [vmem:[%s235 + $0x60] sm:$0xff]
        %v298 = vld [vmem:[%s235 + $0x68] sm:$0xff]
        %v299 = vld [vmem:[%s235 + $0x70] sm:$0xff]
        %v300 = vld [vmem:[%s235 + $0x78] sm:$0xff]
        %v301 = vld [vmem:[%s244] sm:$0xff]
        %v302 = vld [vmem:[%s244 + $0x8] sm:$0xff]
        %v303 = vld [vmem:[%s244 + $0x10] sm:$0xff]
        %v304 = vld [vmem:[%s244 + $0x18] sm:$0xff]
        %v305 = vld [vmem:[%s244 + $0x20] sm:$0xff]
        %v306 = vld [vmem:[%s244 + $0x28] sm:$0xff]
        %v307 = vld [vmem:[%s244 + $0x30] sm:$0xff]
        %v308 = vld [vmem:[%s244 + $0x38] sm:$0xff]
        %v309 = vld [vmem:[%s244 + $0x40] sm:$0xff]
        %v310 = vld [vmem:[%s244 + $0x48] sm:$0xff]
        %v311 = vld [vmem:[%s244 + $0x50] sm:$0xff]
        %v312 = vld [vmem:[%s244 + $0x58] sm:$0xff]
        %v313 = vld [vmem:[%s244 + $0x60] sm:$0xff]
        %v314 = vld [vmem:[%s244 + $0x68] sm:$0xff]
        %v315 = vld [vmem:[%s244 + $0x70] sm:$0xff]
        %v316 = vld [vmem:[%s244 + $0x78] sm:$0xff]
        %v317 = vadd.f32 %v285, %v286
        %v318 = vadd.f32 %v317, %v287
        %v319 = vadd.f32 %v318, %v288
        %v320 = vadd.f32 %v319, %v289
        %v321 = vadd.f32 %v320, %v290
        %v322 = vadd.f32 %v321, %v291
        %v323 = vadd.f32 %v322, %v292
        %v324 = vadd.f32 %v323, %v293
        %v325 = vadd.f32 %v324, %v294
        %v326 = vadd.f32 %v325, %v295
        %v327 = vadd.f32 %v326, %v296
        %v328 = vadd.f32 %v327, %v297
        %v329 = vadd.f32 %v328, %v298
        %v330 = vadd.f32 %v329, %v299
        %v331 = vadd.f32 %v330, %v300
        %v332 = vrot.slane %v331, 4
        %v333 = vadd.f32 %v331, %v332
        %v334 = vrot.slane %v333, 2
        %v335 = vadd.f32 %v333, %v334
        %v336 = vrot.slane %v335, 1
        %v337 = vadd.f32 %v335, %v336
        %338 = vadd.xlane.f32.xlu0 %v337
        %v339 = vpop.xlane.xlu0 %338
        %v340 = vadd.f32 %v301, %v302
        %v341 = vadd.f32 %v340, %v303
        %v342 = vadd.f32 %v341, %v304
        %v343 = vadd.f32 %v342, %v305
        %v344 = vadd.f32 %v343, %v306
        %v345 = vadd.f32 %v344, %v307
        %v346 = vadd.f32 %v345, %v308
        %v347 = vadd.f32 %v346, %v309
        %v348 = vadd.f32 %v347, %v310
        %v349 = vadd.f32 %v348, %v311
        %v350 = vadd.f32 %v349, %v312
        %v351 = vadd.f32 %v350, %v313
        %v352 = vadd.f32 %v351, %v314
        %v353 = vadd.f32 %v352, %v315
        %v354 = vadd.f32 %v353, %v316
        %v355 = vrot.slane %v354, 4
        %v356 = vadd.f32 %v354, %v355
        %v357 = vrot.slane %v356, 2
        %v358 = vadd.f32 %v356, %v357
        %v359 = vrot.slane %v358, 1
        %v360 = vadd.f32 %v358, %v359
        %361 = vadd.xlane.f32.xlu0 %v360
        %v362 = vpop.xlane.xlu0 %361
        %v363 = vadd.f32 %v339, %v362
        %v364 = vmul.f32 %v363, 6.1035156e-05
        %v365 = vadd.f32 %v285, %v303
        %v366 = vadd.f32 %v286, %v304
        %v367 = vadd.f32 %v287, %v305
        %v368 = vadd.f32 %v288, %v306
        %v369 = vadd.f32 %v289, %v307
        %v370 = vadd.f32 %v290, %v308
        %v371 = vadd.f32 %v291, %v309
        %v372 = vadd.f32 %v292, %v310
        %v373 = vadd.f32 %v293, %v311
        %v374 = vadd.f32 %v294, %v312
        %v375 = vadd.f32 %v295, %v313
        %v376 = vadd.f32 %v296, %v314
        %v377 = vadd.f32 %v297, %v315
        %v378 = vadd.f32 %v298, %v316
        %v379 = vadd.f32 %v299, %v301
        %v380 = vadd.f32 %v300, %v302
        %v381 = vmul.f32 %v365, %v365
        %v382 = vmul.f32 %v366, %v366
        %v383 = vmul.f32 %v367, %v367
        %v384 = vmul.f32 %v368, %v368
        %v385 = vmul.f32 %v369, %v369
        %v386 = vmul.f32 %v370, %v370
        %v387 = vmul.f32 %v371, %v371
        %v388 = vmul.f32 %v372, %v372
        %v389 = vmul.f32 %v373, %v373
        %v390 = vmul.f32 %v374, %v374
        %v391 = vmul.f32 %v375, %v375
        %v392 = vmul.f32 %v376, %v376
        %v393 = vmul.f32 %v377, %v377
        %v394 = vmul.f32 %v378, %v378
        %v395 = vmul.f32 %v379, %v379
        %v396 = vmul.f32 %v380, %v380
        %v397 = vadd.f32 %v381, %v382
        %v398 = vadd.f32 %v397, %v383
        %v399 = vadd.f32 %v398, %v384
        %v400 = vadd.f32 %v399, %v385
        %v401 = vadd.f32 %v400, %v386
        %v402 = vadd.f32 %v401, %v387
        %v403 = vadd.f32 %v402, %v388
        %v404 = vadd.f32 %v403, %v389
        %v405 = vadd.f32 %v404, %v390
        %v406 = vadd.f32 %v405, %v391
        %v407 = vadd.f32 %v406, %v392
        %v408 = vadd.f32 %v407, %v393
        %v409 = vadd.f32 %v408, %v394
        %v410 = vadd.f32 %v409, %v395
        %v411 = vadd.f32 %v410, %v396
        %v412 = vrot.slane %v411, 4
        %v413 = vadd.f32 %v411, %v412
        %v414 = vrot.slane %v413, 2
        %v415 = vadd.f32 %v413, %v414
        %v416 = vrot.slane %v415, 1
        %v417 = vadd.f32 %v415, %v416
        %418 = vadd.xlane.f32.xlu0 %v417
        %v419 = vpop.xlane.xlu0 %418
        %v420 = vmul.f32 %v419, 6.1035156e-05
        %v421 = vmul.f32 %v364, %v364
        %v422 = vsub.f32 %v420, %v421
        %v423 = vadd.f32 %v422, 1e-05
        %v424 = vrsqrt.pop %v423
        %v425 = vstv %s283
        %v426 = vmul.f32 %v424, %v425
        %v427 = vmul.f32 %v364, %v426
        %v428 = vstv %s284
        %v429 = vsub.f32 %v428, %v427
        %v430 = vmul.f32 %v365, %v426
        %v431 = vmul.f32 %v366, %v426
        %v432 = vmul.f32 %v367, %v426
        %v433 = vmul.f32 %v368, %v426
        %v434 = vmul.f32 %v369, %v426
        %v435 = vmul.f32 %v370, %v426
        %v436 = vmul.f32 %v371, %v426
        %v437 = vmul.f32 %v372, %v426
        %v438 = vmul.f32 %v373, %v426
        %v439 = vmul.f32 %v374, %v426
        %v440 = vmul.f32 %v375, %v426
        %v441 = vmul.f32 %v376, %v426
        %v442 = vmul.f32 %v377, %v426
        %v443 = vmul.f32 %v378, %v426
        %v444 = vmul.f32 %v379, %v426
        %v445 = vmul.f32 %v380, %v426
        %v446 = vadd.f32 %v430, %v429
        %v447 = vadd.f32 %v431, %v429
        %v448 = vadd.f32 %v432, %v429
        %v449 = vadd.f32 %v433, %v429
        %v450 = vadd.f32 %v434, %v429
        %v451 = vadd.f32 %v435, %v429
        %v452 = vadd.f32 %v436, %v429
        %v453 = vadd.f32 %v437, %v429
        %v454 = vadd.f32 %v438, %v429
        %v455 = vadd.f32 %v439, %v429
        %v456 = vadd.f32 %v440, %v429
        %v457 = vadd.f32 %v441, %v429
        %v458 = vadd.f32 %v442, %v429
        %v459 = vadd.f32 %v443, %v429
        %v460 = vadd.f32 %v444, %v429
        %v461 = vadd.f32 %v445, %v429
        %vm462 = vcmp.ge.f32.partialorder %v446, 0.0
        %vm463 = vcmp.ge.f32.partialorder %v447, 0.0
        %vm464 = vcmp.ge.f32.partialorder %v448, 0.0
        %vm465 = vcmp.ge.f32.partialorder %v449, 0.0
        %vm466 = vcmp.ge.f32.partialorder %v450, 0.0
        %vm467 = vcmp.ge.f32.partialorder %v451, 0.0
        %vm468 = vcmp.ge.f32.partialorder %v452, 0.0
        %vm469 = vcmp.ge.f32.partialorder %v453, 0.0
        %vm470 = vcmp.ge.f32.partialorder %v454, 0.0
        %vm471 = vcmp.ge.f32.partialorder %v455, 0.0
        %vm472 = vcmp.ge.f32.partialorder %v456, 0.0
        %vm473 = vcmp.ge.f32.partialorder %v457, 0.0
        %vm474 = vcmp.ge.f32.partialorder %v458, 0.0
        %vm475 = vcmp.ge.f32.partialorder %v459, 0.0
        %vm476 = vcmp.ge.f32.partialorder %v460, 0.0
        %vm477 = vcmp.ge.f32.partialorder %v461, 0.0
        %v478 = vmul.f32 %v446, 0.01
        %v479 = vmul.f32 %v447, 0.01
        %v480 = vmul.f32 %v448, 0.01
        %v481 = vmul.f32 %v449, 0.01
        %v482 = vmul.f32 %v450, 0.01
        %v483 = vmul.f32 %v451, 0.01
        %v484 = vmul.f32 %v452, 0.01
        %v485 = vmul.f32 %v453, 0.01
        %v486 = vmul.f32 %v454, 0.01
        %v487 = vmul.f32 %v455, 0.01
        %v488 = vmul.f32 %v456, 0.01
        %v489 = vmul.f32 %v457, 0.01
        %v490 = vmul.f32 %v458, 0.01
        %v491 = vmul.f32 %v459, 0.01
        %v492 = vmul.f32 %v460, 0.01
        %v493 = vmul.f32 %v461, 0.01
        %v494 = vsel %vm462, %v446, %v478
        %v495 = vsel %vm463, %v447, %v479
        %v496 = vsel %vm464, %v448, %v480
        %v497 = vsel %vm465, %v449, %v481
        %v498 = vsel %vm466, %v450, %v482
        %v499 = vsel %vm467, %v451, %v483
        %v500 = vsel %vm468, %v452, %v484
        %v501 = vsel %vm469, %v453, %v485
        %v502 = vsel %vm470, %v454, %v486
        %v503 = vsel %vm471, %v455, %v487
        %v504 = vsel %vm472, %v456, %v488
        %v505 = vsel %vm473, %v457, %v489
        %v506 = vsel %vm474, %v458, %v490
        %v507 = vsel %vm475, %v459, %v491
        %v508 = vsel %vm476, %v460, %v492
        %v509 = vsel %vm477, %v461, %v493
        %v510 = vmax.f32 %v494, 0.0
        %v511 = vmax.f32 %v495, 0.0
        %v512 = vmax.f32 %v496, 0.0
        %v513 = vmax.f32 %v497, 0.0
        %v514 = vmax.f32 %v498, 0.0
        %v515 = vmax.f32 %v499, 0.0
        %v516 = vmax.f32 %v500, 0.0
        %v517 = vmax.f32 %v501, 0.0
        %v518 = vmax.f32 %v502, 0.0
        %v519 = vmax.f32 %v503, 0.0
        %v520 = vmax.f32 %v504, 0.0
        %v521 = vmax.f32 %v505, 0.0
        %v522 = vmax.f32 %v506, 0.0
        %v523 = vmax.f32 %v507, 0.0
        %v524 = vmax.f32 %v508, 0.0
        %v525 = vmax.f32 %v509, 0.0
        %v526 = vadd.f32 %v285, %v315
        %v527 = vadd.f32 %v286, %v316
        %v528 = vadd.f32 %v287, %v301
        %v529 = vadd.f32 %v288, %v302
        %v530 = vadd.f32 %v289, %v303
        %v531 = vadd.f32 %v290, %v304
        %v532 = vadd.f32 %v291, %v305
        %v533 = vadd.f32 %v292, %v306
        %v534 = vadd.f32 %v293, %v307
        %v535 = vadd.f32 %v294, %v308
        %v536 = vadd.f32 %v295, %v309
        %v537 = vadd.f32 %v296, %v310
        %v538 = vadd.f32 %v297, %v311
        %v539 = vadd.f32 %v298, %v312
        %v540 = vadd.f32 %v299, %v313
        %v541 = vadd.f32 %v300, %v314
        %v542 = vmul.f32 %v526, %v526
        %v543 = vmul.f32 %v527, %v527
        %v544 = vmul.f32 %v528, %v528
        %v545 = vmul.f32 %v529, %v529
        %v546 = vmul.f32 %v530, %v530
        %v547 = vmul.f32 %v531, %v531
        %v548 = vmul.f32 %v532, %v532
        %v549 = vmul.f32 %v533, %v533
        %v550 = vmul.f32 %v534, %v534
        %v551 = vmul.f32 %v535, %v535
        %v552 = vmul.f32 %v536, %v536
        %v553 = vmul.f32 %v537, %v537
        %v554 = vmul.f32 %v538, %v538
        %v555 = vmul.f32 %v539, %v539
        %v556 = vmul.f32 %v540, %v540
        %v557 = vmul.f32 %v541, %v541
        %v558 = vadd.f32 %v542, %v543
        %v559 = vadd.f32 %v558, %v544
        %v560 = vadd.f32 %v559, %v545
        %v561 = vadd.f32 %v560, %v546
        %v562 = vadd.f32 %v561, %v547
        %v563 = vadd.f32 %v562, %v548
        %v564 = vadd.f32 %v563, %v549
        %v565 = vadd.f32 %v564, %v550
        %v566 = vadd.f32 %v565, %v551
        %v567 = vadd.f32 %v566, %v552
        %v568 = vadd.f32 %v567, %v553
        %v569 = vadd.f32 %v568, %v554
        %v570 = vadd.f32 %v569, %v555
        %v571 = vadd.f32 %v570, %v556
        %v572 = vadd.f32 %v571, %v557
        %v573 = vrot.slane %v572, 4
        %v574 = vadd.f32 %v572, %v573
        %v575 = vrot.slane %v574, 2
        %v576 = vadd.f32 %v574, %v575
        %v577 = vrot.slane %v576, 1
        %v578 = vadd.f32 %v576, %v577
        %579 = vadd.xlane.f32.xlu0 %v578
        %v580 = vpop.xlane.xlu0 %579
        %v581 = vmul.f32 %v580, 6.1035156e-05
        %v582 = vsub.f32 %v581, %v421
        %v583 = vadd.f32 %v582, 1e-05
        %v584 = vrsqrt.pop %v583
        %v585 = vmul.f32 %v584, %v425
        %v586 = vmul.f32 %v364, %v585
        %v587 = vsub.f32 %v428, %v586
        %v588 = vmul.f32 %v526, %v585
        %v589 = vmul.f32 %v527, %v585
        %v590 = vmul.f32 %v528, %v585
        %v591 = vmul.f32 %v529, %v585
        %v592 = vmul.f32 %v530, %v585
        %v593 = vmul.f32 %v531, %v585
        %v594 = vmul.f32 %v532, %v585
        %v595 = vmul.f32 %v533, %v585
        %v596 = vmul.f32 %v534, %v585
        %v597 = vmul.f32 %v535, %v585
        %v598 = vmul.f32 %v536, %v585
        %v599 = vmul.f32 %v537, %v585
        %v600 = vmul.f32 %v538, %v585
        %v601 = vmul.f32 %v539, %v585
        %v602 = vmul.f32 %v540, %v585
        %v603 = vmul.f32 %v541, %v585
        %v604 = vadd.f32 %v588, %v587
        %v605 = vadd.f32 %v589, %v587
        %v606 = vadd.f32 %v590, %v587
        %v607 = vadd.f32 %v591, %v587
        %v608 = vadd.f32 %v592, %v587
        %v609 = vadd.f32 %v593, %v587
        %v610 = vadd.f32 %v594, %v587
        %v611 = vadd.f32 %v595, %v587
        %v612 = vadd.f32 %v596, %v587
        %v613 = vadd.f32 %v597, %v587
        %v614 = vadd.f32 %v598, %v587
        %v615 = vadd.f32 %v599, %v587
        %v616 = vadd.f32 %v600, %v587
        %v617 = vadd.f32 %v601, %v587
        %v618 = vadd.f32 %v602, %v587
        %v619 = vadd.f32 %v603, %v587
        %vm620 = vcmp.ge.f32.partialorder %v604, 0.0
        %vm621 = vcmp.ge.f32.partialorder %v605, 0.0
        %vm622 = vcmp.ge.f32.partialorder %v606, 0.0
        %vm623 = vcmp.ge.f32.partialorder %v607, 0.0
        %vm624 = vcmp.ge.f32.partialorder %v608, 0.0
        %vm625 = vcmp.ge.f32.partialorder %v609, 0.0
        %vm626 = vcmp.ge.f32.partialorder %v610, 0.0
        %vm627 = vcmp.ge.f32.partialorder %v611, 0.0
        %vm628 = vcmp.ge.f32.partialorder %v612, 0.0
        %vm629 = vcmp.ge.f32.partialorder %v613, 0.0
        %vm630 = vcmp.ge.f32.partialorder %v614, 0.0
        %vm631 = vcmp.ge.f32.partialorder %v615, 0.0
        %vm632 = vcmp.ge.f32.partialorder %v616, 0.0
        %vm633 = vcmp.ge.f32.partialorder %v617, 0.0
        %vm634 = vcmp.ge.f32.partialorder %v618, 0.0
        %vm635 = vcmp.ge.f32.partialorder %v619, 0.0
        %v636 = vmul.f32 %v604, 0.01
        %v637 = vmul.f32 %v605, 0.01
        %v638 = vmul.f32 %v606, 0.01
        %v639 = vmul.f32 %v607, 0.01
        %v640 = vmul.f32 %v608, 0.01
        %v641 = vmul.f32 %v609, 0.01
        %v642 = vmul.f32 %v610, 0.01
        %v643 = vmul.f32 %v611, 0.01
        %v644 = vmul.f32 %v612, 0.01
        %v645 = vmul.f32 %v613, 0.01
        %v646 = vmul.f32 %v614, 0.01
        %v647 = vmul.f32 %v615, 0.01
        %v648 = vmul.f32 %v616, 0.01
        %v649 = vmul.f32 %v617, 0.01
        %v650 = vmul.f32 %v618, 0.01
        %v651 = vmul.f32 %v619, 0.01
        %v652 = vsel %vm620, %v604, %v636
        %v653 = vsel %vm621, %v605, %v637
        %v654 = vsel %vm622, %v606, %v638
        %v655 = vsel %vm623, %v607, %v639
        %v656 = vsel %vm624, %v608, %v640
        %v657 = vsel %vm625, %v609, %v641
        %v658 = vsel %vm626, %v610, %v642
        %v659 = vsel %vm627, %v611, %v643
        %v660 = vsel %vm628, %v612, %v644
        %v661 = vsel %vm629, %v613, %v645
        %v662 = vsel %vm630, %v614, %v646
        %v663 = vsel %vm631, %v615, %v647
        %v664 = vsel %vm632, %v616, %v648
        %v665 = vsel %vm633, %v617, %v649
        %v666 = vsel %vm634, %v618, %v650
        %v667 = vsel %vm635, %v619, %v651
        %v668 = vmax.f32 %v510, %v652
        %v669 = vmax.f32 %v511, %v653
        %v670 = vmax.f32 %v512, %v654
        %v671 = vmax.f32 %v513, %v655
        %v672 = vmax.f32 %v514, %v656
        %v673 = vmax.f32 %v515, %v657
        %v674 = vmax.f32 %v516, %v658
        %v675 = vmax.f32 %v517, %v659
        %v676 = vmax.f32 %v518, %v660
        %v677 = vmax.f32 %v519, %v661
        %v678 = vmax.f32 %v520, %v662
        %v679 = vmax.f32 %v521, %v663
        %v680 = vmax.f32 %v522, %v664
        %v681 = vmax.f32 %v523, %v665
        %v682 = vmax.f32 %v524, %v666
        %v683 = vmax.f32 %v525, %v667
        %vm700 = vcmask 1046528
        %v701 = vrot.slane %v301, 1
        %v702 = vrot.slane %v302, 1
        %v703 = vsel %vm700, %v701, %v702
        %v704 = vrot.slane %v303, 1
        %v705 = vrot.slane %v304, 1
        %v706 = vsel %vm700, %v704, %v705
        %v707 = vrot.slane %v305, 1
        %v708 = vrot.slane %v306, 1
        %v709 = vsel %vm700, %v707, %v708
        %v710 = vrot.slane %v307, 1
        %v711 = vrot.slane %v308, 1
        %v712 = vsel %vm700, %v710, %v711
        %v713 = vrot.slane %v309, 1
        %v714 = vrot.slane %v310, 1
        %v715 = vsel %vm700, %v713, %v714
        %v716 = vrot.slane %v311, 1
        %v717 = vrot.slane %v312, 1
        %v718 = vsel %vm700, %v716, %v717
        %v719 = vrot.slane %v313, 1
        %v720 = vrot.slane %v314, 1
        %v721 = vsel %vm700, %v719, %v720
        %v722 = vrot.slane %v315, 1
        %v723 = vrot.slane %v316, 1
        %v724 = vsel %vm700, %v722, %v723
        %v741 = vadd.f32 %v285, %v703
        %v742 = vadd.f32 %v286, %v702
        %v743 = vadd.f32 %v287, %v706
        %v744 = vadd.f32 %v288, %v705
        %v745 = vadd.f32 %v289, %v709
        %v746 = vadd.f32 %v290, %v708
        %v747 = vadd.f32 %v291, %v712
        %v748 = vadd.f32 %v292, %v711
        %v749 = vadd.f32 %v293, %v715
        %v750 = vadd.f32 %v294, %v714
        %v751 = vadd.f32 %v295, %v718
        %v752 = vadd.f32 %v296, %v717
        %v753 = vadd.f32 %v297, %v721
        %v754 = vadd.f32 %v298, %v720
        %v755 = vadd.f32 %v299, %v724
        %v756 = vadd.f32 %v300, %v723
        %v765 = vadd.f32 %v286, %v701
        %v766 = vadd.f32 %v288, %v704
        %v767 = vadd.f32 %v290, %v707
        %v768 = vadd.f32 %v292, %v710
        %v769 = vadd.f32 %v294, %v713
        %v770 = vadd.f32 %v296, %v716
        %v771 = vadd.f32 %v298, %v719
        %v772 = vadd.f32 %v300, %v722
        %v773 = vsel %vm700, %v742, %v765
        %v774 = vsel %vm700, %v744, %v766
        %v775 = vsel %vm700, %v746, %v767
        %v776 = vsel %vm700, %v748, %v768
        %v777 = vsel %vm700, %v750, %v769
        %v778 = vsel %vm700, %v752, %v770
        %v779 = vsel %vm700, %v754, %v771
        %v780 = vsel %vm700, %v756, %v772
        %v781 = vmul.f32 %v741, %v741
        %v782 = vmul.f32 %v773, %v773
        %v783 = vmul.f32 %v743, %v743
        %v784 = vmul.f32 %v774, %v774
        %v785 = vmul.f32 %v745, %v745
        %v786 = vmul.f32 %v775, %v775
        %v787 = vmul.f32 %v747, %v747
        %v788 = vmul.f32 %v776, %v776
        %v789 = vmul.f32 %v749, %v749
        %v790 = vmul.f32 %v777, %v777
        %v791 = vmul.f32 %v751, %v751
        %v792 = vmul.f32 %v778, %v778
        %v793 = vmul.f32 %v753, %v753
        %v794 = vmul.f32 %v779, %v779
        %v795 = vmul.f32 %v755, %v755
        %v796 = vmul.f32 %v780, %v780
        %v797 = vadd.f32 %v781, %v782
        %v798 = vadd.f32 %v797, %v783
        %v799 = vadd.f32 %v798, %v784
        %v800 = vadd.f32 %v799, %v785
        %v801 = vadd.f32 %v800, %v786
        %v802 = vadd.f32 %v801, %v787
        %v803 = vadd.f32 %v802, %v788
        %v804 = vadd.f32 %v803, %v789
        %v805 = vadd.f32 %v804, %v790
        %v806 = vadd.f32 %v805, %v791
        %v807 = vadd.f32 %v806, %v792
        %v808 = vadd.f32 %v807, %v793
        %v809 = vadd.f32 %v808, %v794
        %v810 = vadd.f32 %v809, %v795
        %v811 = vadd.f32 %v810, %v796
        %v812 = vrot.slane %v811, 4
        %v813 = vadd.f32 %v811, %v812
        %v814 = vrot.slane %v813, 2
        %v815 = vadd.f32 %v813, %v814
        %v816 = vrot.slane %v815, 1
        %v817 = vadd.f32 %v815, %v816
        %818 = vadd.xlane.f32.xlu0 %v817
        %v819 = vpop.xlane.xlu0 %818
        %v820 = vmul.f32 %v819, 6.1035156e-05
        %v821 = vsub.f32 %v820, %v421
        %v822 = vadd.f32 %v821, 1e-05
        %v823 = vrsqrt.pop %v822
        %v824 = vmul.f32 %v823, %v425
        %v825 = vmul.f32 %v364, %v824
        %v826 = vsub.f32 %v428, %v825
        %v827 = vmul.f32 %v741, %v824
        %v828 = vmul.f32 %v773, %v824
        %v829 = vmul.f32 %v743, %v824
        %v830 = vmul.f32 %v774, %v824
        %v831 = vmul.f32 %v745, %v824
        %v832 = vmul.f32 %v775, %v824
        %v833 = vmul.f32 %v747, %v824
        %v834 = vmul.f32 %v776, %v824
        %v835 = vmul.f32 %v749, %v824
        %v836 = vmul.f32 %v777, %v824
        %v837 = vmul.f32 %v751, %v824
        %v838 = vmul.f32 %v778, %v824
        %v839 = vmul.f32 %v753, %v824
        %v840 = vmul.f32 %v779, %v824
        %v841 = vmul.f32 %v755, %v824
        %v842 = vmul.f32 %v780, %v824
        %v843 = vadd.f32 %v827, %v826
        %v844 = vadd.f32 %v828, %v826
        %v845 = vadd.f32 %v829, %v826
        %v846 = vadd.f32 %v830, %v826
        %v847 = vadd.f32 %v831, %v826
        %v848 = vadd.f32 %v832, %v826
        %v849 = vadd.f32 %v833, %v826
        %v850 = vadd.f32 %v834, %v826
        %v851 = vadd.f32 %v835, %v826
        %v852 = vadd.f32 %v836, %v826
        %v853 = vadd.f32 %v837, %v826
        %v854 = vadd.f32 %v838, %v826
        %v855 = vadd.f32 %v839, %v826
        %v856 = vadd.f32 %v840, %v826
        %v857 = vadd.f32 %v841, %v826
        %v858 = vadd.f32 %v842, %v826
        %vm859 = vcmp.ge.f32.partialorder %v843, 0.0
        %vm860 = vcmp.ge.f32.partialorder %v844, 0.0
        %vm861 = vcmp.ge.f32.partialorder %v845, 0.0
        %vm862 = vcmp.ge.f32.partialorder %v846, 0.0
        %vm863 = vcmp.ge.f32.partialorder %v847, 0.0
        %vm864 = vcmp.ge.f32.partialorder %v848, 0.0
        %vm865 = vcmp.ge.f32.partialorder %v849, 0.0
        %vm866 = vcmp.ge.f32.partialorder %v850, 0.0
        %vm867 = vcmp.ge.f32.partialorder %v851, 0.0
        %vm868 = vcmp.ge.f32.partialorder %v852, 0.0
        %vm869 = vcmp.ge.f32.partialorder %v853, 0.0
        %vm870 = vcmp.ge.f32.partialorder %v854, 0.0
        %vm871 = vcmp.ge.f32.partialorder %v855, 0.0
        %vm872 = vcmp.ge.f32.partialorder %v856, 0.0
        %vm873 = vcmp.ge.f32.partialorder %v857, 0.0
        %vm874 = vcmp.ge.f32.partialorder %v858, 0.0
        %v875 = vmul.f32 %v843, 0.01
        %v876 = vmul.f32 %v844, 0.01
        %v877 = vmul.f32 %v845, 0.01
        %v878 = vmul.f32 %v846, 0.01
        %v879 = vmul.f32 %v847, 0.01
        %v880 = vmul.f32 %v848, 0.01
        %v881 = vmul.f32 %v849, 0.01
        %v882 = vmul.f32 %v850, 0.01
        %v883 = vmul.f32 %v851, 0.01
        %v884 = vmul.f32 %v852, 0.01
        %v885 = vmul.f32 %v853, 0.01
        %v886 = vmul.f32 %v854, 0.01
        %v887 = vmul.f32 %v855, 0.01
        %v888 = vmul.f32 %v856, 0.01
        %v889 = vmul.f32 %v857, 0.01
        %v890 = vmul.f32 %v858, 0.01
        %v891 = vsel %vm859, %v843, %v875
        %v892 = vsel %vm860, %v844, %v876
        %v893 = vsel %vm861, %v845, %v877
        %v894 = vsel %vm862, %v846, %v878
        %v895 = vsel %vm863, %v847, %v879
        %v896 = vsel %vm864, %v848, %v880
        %v897 = vsel %vm865, %v849, %v881
        %v898 = vsel %vm866, %v850, %v882
        %v899 = vsel %vm867, %v851, %v883
        %v900 = vsel %vm868, %v852, %v884
        %v901 = vsel %vm869, %v853, %v885
        %v902 = vsel %vm870, %v854, %v886
        %v903 = vsel %vm871, %v855, %v887
        %v904 = vsel %vm872, %v856, %v888
        %v905 = vsel %vm873, %v857, %v889
        %v906 = vsel %vm874, %v858, %v890
        %v907 = vmax.f32 %v668, %v891
        %v908 = vmax.f32 %v669, %v892
        %v909 = vmax.f32 %v670, %v893
        %v910 = vmax.f32 %v671, %v894
        %v911 = vmax.f32 %v672, %v895
        %v912 = vmax.f32 %v673, %v896
        %v913 = vmax.f32 %v674, %v897
        %v914 = vmax.f32 %v675, %v898
        %v915 = vmax.f32 %v676, %v899
        %v916 = vmax.f32 %v677, %v900
        %v917 = vmax.f32 %v678, %v901
        %v918 = vmax.f32 %v679, %v902
        %v919 = vmax.f32 %v680, %v903
        %v920 = vmax.f32 %v681, %v904
        %v921 = vmax.f32 %v682, %v905
        %v922 = vmax.f32 %v683, %v906
        %v923 = vrot.slane %v302, 7
        %v924 = vrot.slane %v304, 7
        %v925 = vrot.slane %v306, 7
        %v926 = vrot.slane %v308, 7
        %v927 = vrot.slane %v310, 7
        %v928 = vrot.slane %v312, 7
        %v929 = vrot.slane %v314, 7
        %v930 = vrot.slane %v316, 7
        %v939 = vadd.f32 %v285, %v923
        %v940 = vadd.f32 %v287, %v924
        %v941 = vadd.f32 %v289, %v925
        %v942 = vadd.f32 %v291, %v926
        %v943 = vadd.f32 %v293, %v927
        %v944 = vadd.f32 %v295, %v928
        %v945 = vadd.f32 %v297, %v929
        %v946 = vadd.f32 %v299, %v930
        %vm947 = vcmask 1040384
        %v948 = vrot.slane %v301, 7
        %v949 = vsel %vm947, %v948, %v923
        %v950 = vrot.slane %v303, 7
        %v951 = vsel %vm947, %v950, %v924
        %v952 = vrot.slane %v305, 7
        %v953 = vsel %vm947, %v952, %v925
        %v954 = vrot.slane %v307, 7
        %v955 = vsel %vm947, %v954, %v926
        %v956 = vrot.slane %v309, 7
        %v957 = vsel %vm947, %v956, %v927
        %v958 = vrot.slane %v311, 7
        %v959 = vsel %vm947, %v958, %v928
        %v960 = vrot.slane %v313, 7
        %v961 = vsel %vm947, %v960, %v929
        %v962 = vrot.slane %v315, 7
        %v963 = vsel %vm947, %v962, %v930
        %v980 = vadd.f32 %v285, %v948
        %v981 = vadd.f32 %v286, %v949
        %v982 = vadd.f32 %v287, %v950
        %v983 = vadd.f32 %v288, %v951
        %v984 = vadd.f32 %v289, %v952
        %v985 = vadd.f32 %v290, %v953
        %v986 = vadd.f32 %v291, %v954
        %v987 = vadd.f32 %v292, %v955
        %v988 = vadd.f32 %v293, %v956
        %v989 = vadd.f32 %v294, %v957
        %v990 = vadd.f32 %v295, %v958
        %v991 = vadd.f32 %v296, %v959
        %v992 = vadd.f32 %v297, %v960
        %v993 = vadd.f32 %v298, %v961
        %v994 = vadd.f32 %v299, %v962
        %v995 = vadd.f32 %v300, %v963
        %v996 = vsel %vm947, %v939, %v980
        %v997 = vsel %vm947, %v940, %v982
        %v998 = vsel %vm947, %v941, %v984
        %v999 = vsel %vm947, %v942, %v986
        %v1000 = vsel %vm947, %v943, %v988
        %v1001 = vsel %vm947, %v944, %v990
        %v1002 = vsel %vm947, %v945, %v992
        %v1003 = vsel %vm947, %v946, %v994
        %v1004 = vmul.f32 %v996, %v996
        %v1005 = vmul.f32 %v981, %v981
        %v1006 = vmul.f32 %v997, %v997
        %v1007 = vmul.f32 %v983, %v983
        %v1008 = vmul.f32 %v998, %v998
        %v1009 = vmul.f32 %v985, %v985
        %v1010 = vmul.f32 %v999, %v999
        %v1011 = vmul.f32 %v987, %v987
        %v1012 = vmul.f32 %v1000, %v1000
        %v1013 = vmul.f32 %v989, %v989
        %v1014 = vmul.f32 %v1001, %v1001
        %v1015 = vmul.f32 %v991, %v991
        %v1016 = vmul.f32 %v1002, %v1002
        %v1017 = vmul.f32 %v993, %v993
        %v1018 = vmul.f32 %v1003, %v1003
        %v1019 = vmul.f32 %v995, %v995
        %v1020 = vadd.f32 %v1004, %v1005
        %v1021 = vadd.f32 %v1020, %v1006
        %v1022 = vadd.f32 %v1021, %v1007
        %v1023 = vadd.f32 %v1022, %v1008
        %v1024 = vadd.f32 %v1023, %v1009
        %v1025 = vadd.f32 %v1024, %v1010
        %v1026 = vadd.f32 %v1025, %v1011
        %v1027 = vadd.f32 %v1026, %v1012
        %v1028 = vadd.f32 %v1027, %v1013
        %v1029 = vadd.f32 %v1028, %v1014
        %v1030 = vadd.f32 %v1029, %v1015
        %v1031 = vadd.f32 %v1030, %v1016
        %v1032 = vadd.f32 %v1031, %v1017
        %v1033 = vadd.f32 %v1032, %v1018
        %v1034 = vadd.f32 %v1033, %v1019
        %v1035 = vrot.slane %v1034, 4
        %v1036 = vadd.f32 %v1034, %v1035
        %v1037 = vrot.slane %v1036, 2
        %v1038 = vadd.f32 %v1036, %v1037
        %v1039 = vrot.slane %v1038, 1
        %v1040 = vadd.f32 %v1038, %v1039
        %1041 = vadd.xlane.f32.xlu0 %v1040
        %v1042 = vpop.xlane.xlu0 %1041
        %v1043 = vmul.f32 %v1042, 6.1035156e-05
        %v1044 = vsub.f32 %v1043, %v421
        %v1045 = vadd.f32 %v1044, 1e-05
        %v1046 = vrsqrt.pop %v1045
        %v1047 = vmul.f32 %v1046, %v425
        %v1048 = vmul.f32 %v364, %v1047
        %v1049 = vsub.f32 %v428, %v1048
        %v1050 = vmul.f32 %v996, %v1047
        %v1051 = vmul.f32 %v981, %v1047
        %v1052 = vmul.f32 %v997, %v1047
        %v1053 = vmul.f32 %v983, %v1047
        %v1054 = vmul.f32 %v998, %v1047
        %v1055 = vmul.f32 %v985, %v1047
        %v1056 = vmul.f32 %v999, %v1047
        %v1057 = vmul.f32 %v987, %v1047
        %v1058 = vmul.f32 %v1000, %v1047
        %v1059 = vmul.f32 %v989, %v1047
        %v1060 = vmul.f32 %v1001, %v1047
        %v1061 = vmul.f32 %v991, %v1047
        %v1062 = vmul.f32 %v1002, %v1047
        %v1063 = vmul.f32 %v993, %v1047
        %v1064 = vmul.f32 %v1003, %v1047
        %v1065 = vmul.f32 %v995, %v1047
        %v1066 = vadd.f32 %v1050, %v1049
        %v1067 = vadd.f32 %v1051, %v1049
        %v1068 = vadd.f32 %v1052, %v1049
        %v1069 = vadd.f32 %v1053, %v1049
        %v1070 = vadd.f32 %v1054, %v1049
        %v1071 = vadd.f32 %v1055, %v1049
        %v1072 = vadd.f32 %v1056, %v1049
        %v1073 = vadd.f32 %v1057, %v1049
        %v1074 = vadd.f32 %v1058, %v1049
        %v1075 = vadd.f32 %v1059, %v1049
        %v1076 = vadd.f32 %v1060, %v1049
        %v1077 = vadd.f32 %v1061, %v1049
        %v1078 = vadd.f32 %v1062, %v1049
        %v1079 = vadd.f32 %v1063, %v1049
        %v1080 = vadd.f32 %v1064, %v1049
        %v1081 = vadd.f32 %v1065, %v1049
        %vm1082 = vcmp.ge.f32.partialorder %v1066, 0.0
        %vm1083 = vcmp.ge.f32.partialorder %v1067, 0.0
        %vm1084 = vcmp.ge.f32.partialorder %v1068, 0.0
        %vm1085 = vcmp.ge.f32.partialorder %v1069, 0.0
        %vm1086 = vcmp.ge.f32.partialorder %v1070, 0.0
        %vm1087 = vcmp.ge.f32.partialorder %v1071, 0.0
        %vm1088 = vcmp.ge.f32.partialorder %v1072, 0.0
        %vm1089 = vcmp.ge.f32.partialorder %v1073, 0.0
        %vm1090 = vcmp.ge.f32.partialorder %v1074, 0.0
        %vm1091 = vcmp.ge.f32.partialorder %v1075, 0.0
        %vm1092 = vcmp.ge.f32.partialorder %v1076, 0.0
        %vm1093 = vcmp.ge.f32.partialorder %v1077, 0.0
        %vm1094 = vcmp.ge.f32.partialorder %v1078, 0.0
        %vm1095 = vcmp.ge.f32.partialorder %v1079, 0.0
        %vm1096 = vcmp.ge.f32.partialorder %v1080, 0.0
        %vm1097 = vcmp.ge.f32.partialorder %v1081, 0.0
        %v1098 = vmul.f32 %v1066, 0.01
        %v1099 = vmul.f32 %v1067, 0.01
        %v1100 = vmul.f32 %v1068, 0.01
        %v1101 = vmul.f32 %v1069, 0.01
        %v1102 = vmul.f32 %v1070, 0.01
        %v1103 = vmul.f32 %v1071, 0.01
        %v1104 = vmul.f32 %v1072, 0.01
        %v1105 = vmul.f32 %v1073, 0.01
        %v1106 = vmul.f32 %v1074, 0.01
        %v1107 = vmul.f32 %v1075, 0.01
        %v1108 = vmul.f32 %v1076, 0.01
        %v1109 = vmul.f32 %v1077, 0.01
        %v1110 = vmul.f32 %v1078, 0.01
        %v1111 = vmul.f32 %v1079, 0.01
        %v1112 = vmul.f32 %v1080, 0.01
        %v1113 = vmul.f32 %v1081, 0.01
        %v1114 = vsel %vm1082, %v1066, %v1098
        %v1115 = vsel %vm1083, %v1067, %v1099
        %v1116 = vsel %vm1084, %v1068, %v1100
        %v1117 = vsel %vm1085, %v1069, %v1101
        %v1118 = vsel %vm1086, %v1070, %v1102
        %v1119 = vsel %vm1087, %v1071, %v1103
        %v1120 = vsel %vm1088, %v1072, %v1104
        %v1121 = vsel %vm1089, %v1073, %v1105
        %v1122 = vsel %vm1090, %v1074, %v1106
        %v1123 = vsel %vm1091, %v1075, %v1107
        %v1124 = vsel %vm1092, %v1076, %v1108
        %v1125 = vsel %vm1093, %v1077, %v1109
        %v1126 = vsel %vm1094, %v1078, %v1110
        %v1127 = vsel %vm1095, %v1079, %v1111
        %v1128 = vsel %vm1096, %v1080, %v1112
        %v1129 = vsel %vm1097, %v1081, %v1113
        %v1130 = vmax.f32 %v907, %v1114
        %v1131 = vmax.f32 %v908, %v1115
        %v1132 = vmax.f32 %v909, %v1116
        %v1133 = vmax.f32 %v910, %v1117
        %v1134 = vmax.f32 %v911, %v1118
        %v1135 = vmax.f32 %v912, %v1119
        %v1136 = vmax.f32 %v913, %v1120
        %v1137 = vmax.f32 %v914, %v1121
        %v1138 = vmax.f32 %v915, %v1122
        %v1139 = vmax.f32 %v916, %v1123
        %v1140 = vmax.f32 %v917, %v1124
        %v1141 = vmax.f32 %v918, %v1125
        %v1142 = vmax.f32 %v919, %v1126
        %v1143 = vmax.f32 %v920, %v1127
        %v1144 = vmax.f32 %v921, %v1128
        %v1145 = vmax.f32 %v922, %v1129
        %1146 = vrot.lane.b32.xlu0 %v301, 127
        %v1147 = vpop.permute.xlu0 %1146
        %1148 = vrot.lane.b32.xlu0 %v302, 127
        %v1149 = vpop.permute.xlu0 %1148
        %1150 = vrot.lane.b32.xlu0 %v303, 127
        %v1151 = vpop.permute.xlu0 %1150
        %1152 = vrot.lane.b32.xlu0 %v304, 127
        %v1153 = vpop.permute.xlu0 %1152
        %1154 = vrot.lane.b32.xlu0 %v305, 127
        %v1155 = vpop.permute.xlu0 %1154
        %1156 = vrot.lane.b32.xlu0 %v306, 127
        %v1157 = vpop.permute.xlu0 %1156
        %1158 = vrot.lane.b32.xlu0 %v307, 127
        %v1159 = vpop.permute.xlu0 %1158
        %1160 = vrot.lane.b32.xlu0 %v308, 127
        %v1161 = vpop.permute.xlu0 %1160
        %1162 = vrot.lane.b32.xlu0 %v309, 127
        %v1163 = vpop.permute.xlu0 %1162
        %1164 = vrot.lane.b32.xlu0 %v310, 127
        %v1165 = vpop.permute.xlu0 %1164
        %1166 = vrot.lane.b32.xlu0 %v311, 127
        %v1167 = vpop.permute.xlu0 %1166
        %1168 = vrot.lane.b32.xlu0 %v312, 127
        %v1169 = vpop.permute.xlu0 %1168
        %1170 = vrot.lane.b32.xlu0 %v313, 127
        %v1171 = vpop.permute.xlu0 %1170
        %1172 = vrot.lane.b32.xlu0 %v314, 127
        %v1173 = vpop.permute.xlu0 %1172
        %1174 = vrot.lane.b32.xlu0 %v315, 127
        %v1175 = vpop.permute.xlu0 %1174
        %1176 = vrot.lane.b32.xlu0 %v316, 127
        %v1177 = vpop.permute.xlu0 %1176
        %v1178 = vadd.f32 %v285, %v1147
        %v1179 = vadd.f32 %v286, %v1149
        %v1180 = vadd.f32 %v287, %v1151
        %v1181 = vadd.f32 %v288, %v1153
        %v1182 = vadd.f32 %v289, %v1155
        %v1183 = vadd.f32 %v290, %v1157
        %v1184 = vadd.f32 %v291, %v1159
        %v1185 = vadd.f32 %v292, %v1161
        %v1186 = vadd.f32 %v293, %v1163
        %v1187 = vadd.f32 %v294, %v1165
        %v1188 = vadd.f32 %v295, %v1167
        %v1189 = vadd.f32 %v296, %v1169
        %v1190 = vadd.f32 %v297, %v1171
        %v1191 = vadd.f32 %v298, %v1173
        %v1192 = vadd.f32 %v299, %v1175
        %v1193 = vadd.f32 %v300, %v1177
        %v1194 = vmul.f32 %v1178, %v1178
        %v1195 = vmul.f32 %v1179, %v1179
        %v1196 = vmul.f32 %v1180, %v1180
        %v1197 = vmul.f32 %v1181, %v1181
        %v1198 = vmul.f32 %v1182, %v1182
        %v1199 = vmul.f32 %v1183, %v1183
        %v1200 = vmul.f32 %v1184, %v1184
        %v1201 = vmul.f32 %v1185, %v1185
        %v1202 = vmul.f32 %v1186, %v1186
        %v1203 = vmul.f32 %v1187, %v1187
        %v1204 = vmul.f32 %v1188, %v1188
        %v1205 = vmul.f32 %v1189, %v1189
        %v1206 = vmul.f32 %v1190, %v1190
        %v1207 = vmul.f32 %v1191, %v1191
        %v1208 = vmul.f32 %v1192, %v1192
        %v1209 = vmul.f32 %v1193, %v1193
        %v1210 = vadd.f32 %v1194, %v1195
        %v1211 = vadd.f32 %v1210, %v1196
        %v1212 = vadd.f32 %v1211, %v1197
        %v1213 = vadd.f32 %v1212, %v1198
        %v1214 = vadd.f32 %v1213, %v1199
        %v1215 = vadd.f32 %v1214, %v1200
        %v1216 = vadd.f32 %v1215, %v1201
        %v1217 = vadd.f32 %v1216, %v1202
        %v1218 = vadd.f32 %v1217, %v1203
        %v1219 = vadd.f32 %v1218, %v1204
        %v1220 = vadd.f32 %v1219, %v1205
        %v1221 = vadd.f32 %v1220, %v1206
        %v1222 = vadd.f32 %v1221, %v1207
        %v1223 = vadd.f32 %v1222, %v1208
        %v1224 = vadd.f32 %v1223, %v1209
        %v1225 = vrot.slane %v1224, 4
        %v1226 = vadd.f32 %v1224, %v1225
        %v1227 = vrot.slane %v1226, 2
        %v1228 = vadd.f32 %v1226, %v1227
        %v1229 = vrot.slane %v1228, 1
        %v1230 = vadd.f32 %v1228, %v1229
        %1231 = vadd.xlane.f32.xlu0 %v1230
        %v1232 = vpop.xlane.xlu0 %1231
        %v1233 = vmul.f32 %v1232, 6.1035156e-05
        %v1234 = vsub.f32 %v1233, %v421
        %v1235 = vadd.f32 %v1234, 1e-05
        %v1236 = vrsqrt.pop %v1235
        %v1237 = vmul.f32 %v1236, %v425
        %v1238 = vmul.f32 %v364, %v1237
        %v1239 = vsub.f32 %v428, %v1238
        %v1240 = vmul.f32 %v1178, %v1237
        %v1241 = vmul.f32 %v1179, %v1237
        %v1242 = vmul.f32 %v1180, %v1237
        %v1243 = vmul.f32 %v1181, %v1237
        %v1244 = vmul.f32 %v1182, %v1237
        %v1245 = vmul.f32 %v1183, %v1237
        %v1246 = vmul.f32 %v1184, %v1237
        %v1247 = vmul.f32 %v1185, %v1237
        %v1248 = vmul.f32 %v1186, %v1237
        %v1249 = vmul.f32 %v1187, %v1237
        %v1250 = vmul.f32 %v1188, %v1237
        %v1251 = vmul.f32 %v1189, %v1237
        %v1252 = vmul.f32 %v1190, %v1237
        %v1253 = vmul.f32 %v1191, %v1237
        %v1254 = vmul.f32 %v1192, %v1237
        %v1255 = vmul.f32 %v1193, %v1237
        %v1256 = vadd.f32 %v1240, %v1239
        %v1257 = vadd.f32 %v1241, %v1239
        %v1258 = vadd.f32 %v1242, %v1239
        %v1259 = vadd.f32 %v1243, %v1239
        %v1260 = vadd.f32 %v1244, %v1239
        %v1261 = vadd.f32 %v1245, %v1239
        %v1262 = vadd.f32 %v1246, %v1239
        %v1263 = vadd.f32 %v1247, %v1239
        %v1264 = vadd.f32 %v1248, %v1239
        %v1265 = vadd.f32 %v1249, %v1239
        %v1266 = vadd.f32 %v1250, %v1239
        %v1267 = vadd.f32 %v1251, %v1239
        %v1268 = vadd.f32 %v1252, %v1239
        %v1269 = vadd.f32 %v1253, %v1239
        %v1270 = vadd.f32 %v1254, %v1239
        %v1271 = vadd.f32 %v1255, %v1239
        %vm1272 = vcmp.ge.f32.partialorder %v1256, 0.0
        %vm1273 = vcmp.ge.f32.partialorder %v1257, 0.0
        %vm1274 = vcmp.ge.f32.partialorder %v1258, 0.0
        %vm1275 = vcmp.ge.f32.partialorder %v1259, 0.0
        %vm1276 = vcmp.ge.f32.partialorder %v1260, 0.0
        %vm1277 = vcmp.ge.f32.partialorder %v1261, 0.0
        %vm1278 = vcmp.ge.f32.partialorder %v1262, 0.0
        %vm1279 = vcmp.ge.f32.partialorder %v1263, 0.0
        %vm1280 = vcmp.ge.f32.partialorder %v1264, 0.0
        %vm1281 = vcmp.ge.f32.partialorder %v1265, 0.0
        %vm1282 = vcmp.ge.f32.partialorder %v1266, 0.0
        %vm1283 = vcmp.ge.f32.partialorder %v1267, 0.0
        %vm1284 = vcmp.ge.f32.partialorder %v1268, 0.0
        %vm1285 = vcmp.ge.f32.partialorder %v1269, 0.0
        %vm1286 = vcmp.ge.f32.partialorder %v1270, 0.0
        %vm1287 = vcmp.ge.f32.partialorder %v1271, 0.0
        %v1288 = vmul.f32 %v1256, 0.01
        %v1289 = vmul.f32 %v1257, 0.01
        %v1290 = vmul.f32 %v1258, 0.01
        %v1291 = vmul.f32 %v1259, 0.01
        %v1292 = vmul.f32 %v1260, 0.01
        %v1293 = vmul.f32 %v1261, 0.01
        %v1294 = vmul.f32 %v1262, 0.01
        %v1295 = vmul.f32 %v1263, 0.01
        %v1296 = vmul.f32 %v1264, 0.01
        %v1297 = vmul.f32 %v1265, 0.01
        %v1298 = vmul.f32 %v1266, 0.01
        %v1299 = vmul.f32 %v1267, 0.01
        %v1300 = vmul.f32 %v1268, 0.01
        %v1301 = vmul.f32 %v1269, 0.01
        %v1302 = vmul.f32 %v1270, 0.01
        %v1303 = vmul.f32 %v1271, 0.01
        %v1304 = vsel %vm1272, %v1256, %v1288
        %v1305 = vsel %vm1273, %v1257, %v1289
        %v1306 = vsel %vm1274, %v1258, %v1290
        %v1307 = vsel %vm1275, %v1259, %v1291
        %v1308 = vsel %vm1276, %v1260, %v1292
        %v1309 = vsel %vm1277, %v1261, %v1293
        %v1310 = vsel %vm1278, %v1262, %v1294
        %v1311 = vsel %vm1279, %v1263, %v1295
        %v1312 = vsel %vm1280, %v1264, %v1296
        %v1313 = vsel %vm1281, %v1265, %v1297
        %v1314 = vsel %vm1282, %v1266, %v1298
        %v1315 = vsel %vm1283, %v1267, %v1299
        %v1316 = vsel %vm1284, %v1268, %v1300
        %v1317 = vsel %vm1285, %v1269, %v1301
        %v1318 = vsel %vm1286, %v1270, %v1302
        %v1319 = vsel %vm1287, %v1271, %v1303
        %v1320 = vmax.f32 %v1130, %v1304
        %v1321 = vmax.f32 %v1131, %v1305
        %v1322 = vmax.f32 %v1132, %v1306
        %v1323 = vmax.f32 %v1133, %v1307
        %v1324 = vmax.f32 %v1134, %v1308
        %v1325 = vmax.f32 %v1135, %v1309
        %v1326 = vmax.f32 %v1136, %v1310
        %v1327 = vmax.f32 %v1137, %v1311
        %v1328 = vmax.f32 %v1138, %v1312
        %v1329 = vmax.f32 %v1139, %v1313
        %v1330 = vmax.f32 %v1140, %v1314
        %v1331 = vmax.f32 %v1141, %v1315
        %v1332 = vmax.f32 %v1142, %v1316
        %v1333 = vmax.f32 %v1143, %v1317
        %v1334 = vmax.f32 %v1144, %v1318
        %v1335 = vmax.f32 %v1145, %v1319
        %1336 = vrot.lane.b32.xlu0 %v301, 1
        %v1337 = vpop.permute.xlu0 %1336
        %1338 = vrot.lane.b32.xlu0 %v302, 1
        %v1339 = vpop.permute.xlu0 %1338
        %1340 = vrot.lane.b32.xlu0 %v303, 1
        %v1341 = vpop.permute.xlu0 %1340
        %1342 = vrot.lane.b32.xlu0 %v304, 1
        %v1343 = vpop.permute.xlu0 %1342
        %1344 = vrot.lane.b32.xlu0 %v305, 1
        %v1345 = vpop.permute.xlu0 %1344
        %1346 = vrot.lane.b32.xlu0 %v306, 1
        %v1347 = vpop.permute.xlu0 %1346
        %1348 = vrot.lane.b32.xlu0 %v307, 1
        %v1349 = vpop.permute.xlu0 %1348
        %1350 = vrot.lane.b32.xlu0 %v308, 1
        %v1351 = vpop.permute.xlu0 %1350
        %1352 = vrot.lane.b32.xlu0 %v309, 1
        %v1353 = vpop.permute.xlu0 %1352
        %1354 = vrot.lane.b32.xlu0 %v310, 1
        %v1355 = vpop.permute.xlu0 %1354
        %1356 = vrot.lane.b32.xlu0 %v311, 1
        %v1357 = vpop.permute.xlu0 %1356
        %1358 = vrot.lane.b32.xlu0 %v312, 1
        %v1359 = vpop.permute.xlu0 %1358
        %1360 = vrot.lane.b32.xlu0 %v313, 1
        %v1361 = vpop.permute.xlu0 %1360
        %1362 = vrot.lane.b32.xlu0 %v314, 1
        %v1363 = vpop.permute.xlu0 %1362
        %1364 = vrot.lane.b32.xlu0 %v315, 1
        %v1365 = vpop.permute.xlu0 %1364
        %1366 = vrot.lane.b32.xlu0 %v316, 1
        %v1367 = vpop.permute.xlu0 %1366
        %v1368 = vadd.f32 %v285, %v1337
        %v1369 = vadd.f32 %v286, %v1339
        %v1370 = vadd.f32 %v287, %v1341
        %v1371 = vadd.f32 %v288, %v1343
        %v1372 = vadd.f32 %v289, %v1345
        %v1373 = vadd.f32 %v290, %v1347
        %v1374 = vadd.f32 %v291, %v1349
        %v1375 = vadd.f32 %v292, %v1351
        %v1376 = vadd.f32 %v293, %v1353
        %v1377 = vadd.f32 %v294, %v1355
        %v1378 = vadd.f32 %v295, %v1357
        %v1379 = vadd.f32 %v296, %v1359
        %v1380 = vadd.f32 %v297, %v1361
        %v1381 = vadd.f32 %v298, %v1363
        %v1382 = vadd.f32 %v299, %v1365
        %v1383 = vadd.f32 %v300, %v1367
        %v1384 = vmul.f32 %v1368, %v1368
        %v1385 = vmul.f32 %v1369, %v1369
        %v1386 = vmul.f32 %v1370, %v1370
        %v1387 = vmul.f32 %v1371, %v1371
        %v1388 = vmul.f32 %v1372, %v1372
        %v1389 = vmul.f32 %v1373, %v1373
        %v1390 = vmul.f32 %v1374, %v1374
        %v1391 = vmul.f32 %v1375, %v1375
        %v1392 = vmul.f32 %v1376, %v1376
        %v1393 = vmul.f32 %v1377, %v1377
        %v1394 = vmul.f32 %v1378, %v1378
        %v1395 = vmul.f32 %v1379, %v1379
        %v1396 = vmul.f32 %v1380, %v1380
        %v1397 = vmul.f32 %v1381, %v1381
        %v1398 = vmul.f32 %v1382, %v1382
        %v1399 = vmul.f32 %v1383, %v1383
        %v1400 = vadd.f32 %v1384, %v1385
        %v1401 = vadd.f32 %v1400, %v1386
        %v1402 = vadd.f32 %v1401, %v1387
        %v1403 = vadd.f32 %v1402, %v1388
        %v1404 = vadd.f32 %v1403, %v1389
        %v1405 = vadd.f32 %v1404, %v1390
        %v1406 = vadd.f32 %v1405, %v1391
        %v1407 = vadd.f32 %v1406, %v1392
        %v1408 = vadd.f32 %v1407, %v1393
        %v1409 = vadd.f32 %v1408, %v1394
        %v1410 = vadd.f32 %v1409, %v1395
        %v1411 = vadd.f32 %v1410, %v1396
        %v1412 = vadd.f32 %v1411, %v1397
        %v1413 = vadd.f32 %v1412, %v1398
        %v1414 = vadd.f32 %v1413, %v1399
        %v1415 = vrot.slane %v1414, 4
        %v1416 = vadd.f32 %v1414, %v1415
        %v1417 = vrot.slane %v1416, 2
        %v1418 = vadd.f32 %v1416, %v1417
        %v1419 = vrot.slane %v1418, 1
        %v1420 = vadd.f32 %v1418, %v1419
        %1421 = vadd.xlane.f32.xlu0 %v1420
        %v1422 = vpop.xlane.xlu0 %1421
        %v1423 = vmul.f32 %v1422, 6.1035156e-05
        %v1424 = vsub.f32 %v1423, %v421
        %v1425 = vadd.f32 %v1424, 1e-05
        %v1426 = vrsqrt.pop %v1425
        %v1427 = vmul.f32 %v1426, %v425
        %v1428 = vmul.f32 %v364, %v1427
        %v1429 = vsub.f32 %v428, %v1428
        %v1430 = vmul.f32 %v1368, %v1427
        %v1431 = vmul.f32 %v1369, %v1427
        %v1432 = vmul.f32 %v1370, %v1427
        %v1433 = vmul.f32 %v1371, %v1427
        %v1434 = vmul.f32 %v1372, %v1427
        %v1435 = vmul.f32 %v1373, %v1427
        %v1436 = vmul.f32 %v1374, %v1427
        %v1437 = vmul.f32 %v1375, %v1427
        %v1438 = vmul.f32 %v1376, %v1427
        %v1439 = vmul.f32 %v1377, %v1427
        %v1440 = vmul.f32 %v1378, %v1427
        %v1441 = vmul.f32 %v1379, %v1427
        %v1442 = vmul.f32 %v1380, %v1427
        %v1443 = vmul.f32 %v1381, %v1427
        %v1444 = vmul.f32 %v1382, %v1427
        %v1445 = vmul.f32 %v1383, %v1427
        %v1446 = vadd.f32 %v1430, %v1429
        %v1447 = vadd.f32 %v1431, %v1429
        %v1448 = vadd.f32 %v1432, %v1429
        %v1449 = vadd.f32 %v1433, %v1429
        %v1450 = vadd.f32 %v1434, %v1429
        %v1451 = vadd.f32 %v1435, %v1429
        %v1452 = vadd.f32 %v1436, %v1429
        %v1453 = vadd.f32 %v1437, %v1429
        %v1454 = vadd.f32 %v1438, %v1429
        %v1455 = vadd.f32 %v1439, %v1429
        %v1456 = vadd.f32 %v1440, %v1429
        %v1457 = vadd.f32 %v1441, %v1429
        %v1458 = vadd.f32 %v1442, %v1429
        %v1459 = vadd.f32 %v1443, %v1429
        %v1460 = vadd.f32 %v1444, %v1429
        %v1461 = vadd.f32 %v1445, %v1429
        %vm1462 = vcmp.ge.f32.partialorder %v1446, 0.0
        %vm1463 = vcmp.ge.f32.partialorder %v1447, 0.0
        %vm1464 = vcmp.ge.f32.partialorder %v1448, 0.0
        %vm1465 = vcmp.ge.f32.partialorder %v1449, 0.0
        %vm1466 = vcmp.ge.f32.partialorder %v1450, 0.0
        %vm1467 = vcmp.ge.f32.partialorder %v1451, 0.0
        %vm1468 = vcmp.ge.f32.partialorder %v1452, 0.0
        %vm1469 = vcmp.ge.f32.partialorder %v1453, 0.0
        %vm1470 = vcmp.ge.f32.partialorder %v1454, 0.0
        %vm1471 = vcmp.ge.f32.partialorder %v1455, 0.0
        %vm1472 = vcmp.ge.f32.partialorder %v1456, 0.0
        %vm1473 = vcmp.ge.f32.partialorder %v1457, 0.0
        %vm1474 = vcmp.ge.f32.partialorder %v1458, 0.0
        %vm1475 = vcmp.ge.f32.partialorder %v1459, 0.0
        %vm1476 = vcmp.ge.f32.partialorder %v1460, 0.0
        %vm1477 = vcmp.ge.f32.partialorder %v1461, 0.0
        %v1478 = vmul.f32 %v1446, 0.01
        %v1479 = vmul.f32 %v1447, 0.01
        %v1480 = vmul.f32 %v1448, 0.01
        %v1481 = vmul.f32 %v1449, 0.01
        %v1482 = vmul.f32 %v1450, 0.01
        %v1483 = vmul.f32 %v1451, 0.01
        %v1484 = vmul.f32 %v1452, 0.01
        %v1485 = vmul.f32 %v1453, 0.01
        %v1486 = vmul.f32 %v1454, 0.01
        %v1487 = vmul.f32 %v1455, 0.01
        %v1488 = vmul.f32 %v1456, 0.01
        %v1489 = vmul.f32 %v1457, 0.01
        %v1490 = vmul.f32 %v1458, 0.01
        %v1491 = vmul.f32 %v1459, 0.01
        %v1492 = vmul.f32 %v1460, 0.01
        %v1493 = vmul.f32 %v1461, 0.01
        %v1494 = vsel %vm1462, %v1446, %v1478
        %v1495 = vsel %vm1463, %v1447, %v1479
        %v1496 = vsel %vm1464, %v1448, %v1480
        %v1497 = vsel %vm1465, %v1449, %v1481
        %v1498 = vsel %vm1466, %v1450, %v1482
        %v1499 = vsel %vm1467, %v1451, %v1483
        %v1500 = vsel %vm1468, %v1452, %v1484
        %v1501 = vsel %vm1469, %v1453, %v1485
        %v1502 = vsel %vm1470, %v1454, %v1486
        %v1503 = vsel %vm1471, %v1455, %v1487
        %v1504 = vsel %vm1472, %v1456, %v1488
        %v1505 = vsel %vm1473, %v1457, %v1489
        %v1506 = vsel %vm1474, %v1458, %v1490
        %v1507 = vsel %vm1475, %v1459, %v1491
        %v1508 = vsel %vm1476, %v1460, %v1492
        %v1509 = vsel %vm1477, %v1461, %v1493
        %v1510 = vmax.f32 %v1320, %v1494
        %v1511 = vmax.f32 %v1321, %v1495
        %v1512 = vmax.f32 %v1322, %v1496
        %v1513 = vmax.f32 %v1323, %v1497
        %v1514 = vmax.f32 %v1324, %v1498
        %v1515 = vmax.f32 %v1325, %v1499
        %v1516 = vmax.f32 %v1326, %v1500
        %v1517 = vmax.f32 %v1327, %v1501
        %v1518 = vmax.f32 %v1328, %v1502
        %v1519 = vmax.f32 %v1329, %v1503
        %v1520 = vmax.f32 %v1330, %v1504
        %v1521 = vmax.f32 %v1331, %v1505
        %v1522 = vmax.f32 %v1332, %v1506
        %v1523 = vmax.f32 %v1333, %v1507
        %v1524 = vmax.f32 %v1334, %v1508
        %v1525 = vmax.f32 %v1335, %v1509
        %1526 = vst [vmem:[%s282] sm:$0xff] %v1510
        %1527 = vst [vmem:[%s282 + $0x8] sm:$0xff] %v1511
        %1528 = vst [vmem:[%s282 + $0x10] sm:$0xff] %v1512
        %1529 = vst [vmem:[%s282 + $0x18] sm:$0xff] %v1513
        %1530 = vst [vmem:[%s282 + $0x20] sm:$0xff] %v1514
        %1531 = vst [vmem:[%s282 + $0x28] sm:$0xff] %v1515
        %1532 = vst [vmem:[%s282 + $0x30] sm:$0xff] %v1516
        %1533 = vst [vmem:[%s282 + $0x38] sm:$0xff] %v1517
        %1534 = vst [vmem:[%s282 + $0x40] sm:$0xff] %v1518
        %1535 = vst [vmem:[%s282 + $0x48] sm:$0xff] %v1519
        %1536 = vst [vmem:[%s282 + $0x50] sm:$0xff] %v1520
        %1537 = vst [vmem:[%s282 + $0x58] sm:$0xff] %v1521
        %1538 = vst [vmem:[%s282 + $0x60] sm:$0xff] %v1522
        %1539 = vst [vmem:[%s282 + $0x68] sm:$0xff] %v1523
        %1540 = vst [vmem:[%s282 + $0x70] sm:$0xff] %v1524
        %1541 = vst [vmem:[%s282 + $0x78] sm:$0xff] %v1525
        %s1542 = sand.u32 %s128, 1
        %s1543 = scalar_lea.sflag [#allocation4], %s1542
        %s1544 = sand.u32 %s128, 1
        %s1545 = smul.addr %s1544, 128
        %s1546 = scalar_lea.vmem [#allocation11], %s1545
        // Predicated region
        $region53: #{unroll_max.1} parent=35 // pred_check
          %p1547 = pneg %p138
        $region54: #{unroll_max.1} parent=35 // pred_check_branch
          %1549 = sbr.rel (%p1547) target = $region56
        $region55: #{unroll_max.1} parent=35 // pred_region
          %s1551 = ssub.s32 2048, 2048
          %1552 = vsyncadd %s1543, %s1551
          %s1553 = smul.addr %s26, 16
          %s1554 = smul.addr %s1553, 128
          %s1555 = scalar_lea.hbm %s4, %s1554
          %s1556 = sshll.u32 %s1546, 4
          %s1557 = int_to_ptr.vmem [resolvable:$true] %s1556
          %1562 = dma.vmem_to_hbm [thread:$0]  %s1557, 2048, %s1555, %s1543, 128, 128, 8
        $region56: #{unroll_max.1} parent=35 // pred_fallthru
          _
      $region36: #{unroll_max.1} parent=5 // pred_fallthru
        _
      %p1563 = scmp.le.s32.totalorder 2, %s21
      // Predicated region
      $region57: #{unroll_max.1} parent=5 // pred_check
        %p1564 = pneg %p1563
      $region58: #{unroll_max.1} parent=5 // pred_check_branch
        %1566 = sbr.rel (%p1564) target = $region60
      $region59: #{unroll_max.1} parent=5 // pred_region
        %s1567 = ssub.s32 %s21, 2
        // Predicated region
        $region61: #{unroll_max.1} parent=59 // pred_check
          %p1568 = pneg %p144
        $region62: #{unroll_max.1} parent=59 // pred_check_branch
          %1570 = sbr.rel (%p1568) target = $region64
        $region63: #{unroll_max.1} parent=59 // pred_region
          %s1571 = sand.u32 %s129, 1
          %s1572 = scalar_lea.sflag [#allocation4], %s1571
          %s1573 = sand.u32 %s129, 1
          %s1574 = smul.addr %s1573, 128
          %s1575 = scalar_lea.vmem [#allocation11], %s1574
          %1576 = dma.done %s1572, 2048
        $region64: #{unroll_max.1} parent=59 // pred_fallthru
          _
      $region60: #{unroll_max.1} parent=5 // pred_fallthru
        _
    $region6: #{unroll_max.1} parent=1 // loop_footer
      %s25 = sadd.s32 1, %s21
    $region7: #{unroll_max.1} parent=1 // loop_footer_branch
      %20 = sbr.rel target = $region3
    $region8: #{unroll_max.1} parent=1 // loop_exit
      _
    %1577 = vsyncpa [#allocation3], 1
    %s1578 = scalar_lea.sflag [#allocation3], 1
    %1579 = vsyncpa %s1578, 1
    %1580 = vsyncpa [#allocation7], 1
    %s1581 = scalar_lea.sflag [#allocation7], 1
    %1582 = vsyncpa %s1581, 1
    %1583 = vsyncpa [#allocation4], 1
    %s1584 = scalar_lea.sflag [#allocation4], 1
    %1585 = vsyncpa %s1584, 1
    %1586 = vsyncpa [#allocation5], 1
    %s1587 = scalar_lea.sflag [#allocation5], 1
    %1588 = vsyncpa %s1587, 1
    %1589 = vsyncpa [#allocation10], 1

</llo_original>
